<compile_context>
chip_gen: v7x
topology: tpu7x:2x2x1
jax: 0.10.0
libtpu: 0.0.40
codegen_flags: <defaults>
</compile_context>

<pallas_src>
import jax
import jax.numpy as jnp
from jax import lax
from jax.experimental import pallas as pl
from jax.experimental.pallas import tpu as pltpu

NEG = -1e30                      # epilogue mask value (f32 only): never wins max, exp -> 0
EXPERT_OUT = (10, 6, 2)          # per-expert output widths
EXPERT_OFF = (0, 10, 16)         # tight-packed column offsets
N_EXPERTS = len(EXPERT_OUT)
N_OUT = sum(EXPERT_OUT)          # fused expert output width (18)


def _round_up(n, g):
    return ((n + g - 1) // g) * g


def moe_kernel(x_ref, dslab_ref, wb_ref, bb_ref, we_ref, be_ref, pred_ref, loss_ref):
    """One batch tile in natural (batch, feature) layout."""
    # ---- backbone: feat = x @ Wb + bb  (bf16 MXU operands, f32 accumulate) ----
    xb = x_ref[...].astype(jnp.bfloat16)                                   # (tb, d_in)
    feat = jnp.dot(xb, wb_ref[...],
                   preferred_element_type=jnp.float32) + bb_ref[...]       # (tb, dim) f32

    # ---- fused expert matmul over the tightly packed expert columns ----
    logits = jnp.dot(feat.astype(jnp.bfloat16), we_ref[...],
                     preferred_element_type=jnp.float32) + be_ref[...]     # (tb, 18) f32

    ds = dslab_ref[:, 0:1]                                                  # (tb, 1) expert id
    lab = dslab_ref[:, 1:2]                                                 # (tb, 1) class label
    tb, n_out = logits.shape

    # Column-ownership mask: columns [off_e, off_e + width_e) belong to this sample's expert.
    col = lax.broadcasted_iota(jnp.int32, (tb, n_out), 1)
    low = jnp.where(ds == 0, EXPERT_OFF[0],
                    jnp.where(ds == 1, EXPERT_OFF[1], EXPERT_OFF[2])).astype(jnp.int32)
    width = jnp.where(ds == 0, EXPERT_OUT[0],
                      jnp.where(ds == 1, EXPERT_OUT[1], EXPERT_OUT[2])).astype(jnp.int32)
    sel = (col >= low) & (col < low + width)
    lsel = jnp.where(sel, logits, NEG)                                      # non-selected -> -1e30

    # ---- prediction: first index achieving the max (torch.max semantics) ----
    m = jnp.max(lsel, axis=1, keepdims=True)                                # (tb, 1)
    first = jnp.min(jnp.where(lsel == m, col, n_out), axis=1, keepdims=True)
    pred_ref[...] = (first - low).astype(jnp.int32)

    # ---- cross-entropy per sample (summed in the wrapper) ----
    lse = m + jnp.log(jnp.sum(jnp.exp(lsel - m), axis=1, keepdims=True))    # (tb, 1)
    picked = jnp.sum(jnp.where(col == low + lab, logits, 0.0),
                     axis=1, keepdims=True)
    loss_ref[...] = lse - picked


def _choose_tile_b(B):
    """Big tiles amortize per-step overhead; keep >=4 grid steps when the batch allows
    (v7x: two TensorCores, each needs >=2 steps for double-buffering)."""
    tile_b = 512
    while tile_b > 128 and B < 4 * tile_b:
        tile_b //= 2
    return min(tile_b, _round_up(max(B, 8), 8))


def _vmem_limit_bytes(tile_b, d_in, dim, n_out):
    pad = _round_up
    est = (
        2 * pad(tile_b, 8) * pad(d_in, 128) * 4            # x tiles (f32, double-buffered)
        + 2 * pad(tile_b, 8) * 128 * 4                     # packed ds/label tiles
        + 2 * pad(d_in, 8) * pad(dim, 128) * 2             # Wb bf16 (Pallas double-buffers)
        + 2 * pad(dim, 8) * pad(n_out, 128) * 2            # We bf16
        + 2 * 8 * (pad(dim, 128) + pad(n_out, 128)) * 4    # biases
        + 2 * 2 * pad(tile_b, 8) * 128 * 4                 # pred/loss output tiles
        + 6 * pad(tile_b, 8) * pad(dim, 128) * 4           # f32 feat/logits/epilogue scratch
    )
    # Headroom, floor above v5e's 16 MiB default scoped limit, cap below v7x's 64 MiB VMEM.
    return int(min(max(2 * est, 32 << 20), 56 << 20))


def simple_moe_forward(x, ds, label, Wb, bb, We_cat, be_cat, *, tile_b=None):
    B, d_in = x.shape
    dim, n_out = We_cat.shape

    if tile_b is None:
        tile_b = _choose_tile_b(B)

    # Pad batch to the tile grain (padded rows use expert id 0 / label 0 and are sliced off).
    Bp = _round_up(B, tile_b)
    if Bp != B:
        x = jnp.pad(x, ((0, Bp - B), (0, 0)))
        ds = jnp.pad(ds, (0, Bp - B))
        label = jnp.pad(label, (0, Bp - B))

    # Tiny wrapper-side prep (no large materializations): pack ds/label, cast small weights.
    dslab = jnp.stack([ds.astype(jnp.int32), label.astype(jnp.int32)], axis=1)   # (Bp, 2)
    Wb_b = Wb.astype(jnp.bfloat16)                    # (d_in, dim)
    We_b = We_cat.astype(jnp.bfloat16)                # (dim, 18)
    bb_r = bb.reshape(1, dim).astype(jnp.float32)
    be_r = be_cat.reshape(1, n_out).astype(jnp.float32)

    grid = (Bp // tile_b,)
    pred, loss_per = pl.pallas_call(
        moe_kernel,
        out_shape=(jax.ShapeDtypeStruct((Bp, 1), jnp.int32),      # predictions
                   jax.ShapeDtypeStruct((Bp, 1), jnp.float32)),   # per-sample CE loss
        grid_spec=pltpu.PrefetchScalarGridSpec(
            num_scalar_prefetch=0,
            grid=grid,
            in_specs=[
                pl.BlockSpec((tile_b, d_in), lambda i: (i, 0)),   # x   (pipelined, f32)
                pl.BlockSpec((tile_b, 2), lambda i: (i, 0)),      # ds/label packed
                pl.BlockSpec((d_in, dim), lambda i: (0, 0)),      # Wb  (VMEM resident)
                pl.BlockSpec((1, dim), lambda i: (0, 0)),         # bb
                pl.BlockSpec((dim, n_out), lambda i: (0, 0)),     # We_cat (resident)
                pl.BlockSpec((1, n_out), lambda i: (0, 0)),       # be_cat
            ],
            out_specs=(pl.BlockSpec((tile_b, 1), lambda i: (i, 0)),
                       pl.BlockSpec((tile_b, 1), lambda i: (i, 0))),
        ),
        compiler_params=pltpu.CompilerParams(
            dimension_semantics=("parallel",),
            vmem_limit_bytes=_vmem_limit_bytes(tile_b, d_in, dim, n_out)),
    )(x, dslab, Wb_b, bb_r, We_b, be_r)

    return pred[:B, 0], jnp.sum(loss_per[:B, 0])


def init_params(key, d_in, dim):
    """Torch-Linear-style init; experts fused into a tightly packed (dim, 18) weight."""
    ks = jax.random.split(key, 2 + 2 * N_EXPERTS)
    b_bb = 1.0 / jnp.sqrt(d_in)
    Wb = jax.random.uniform(ks[0], (d_in, dim), jnp.float32, -b_bb, b_bb)
    bb = jax.random.uniform(ks[1], (dim,), jnp.float32, -b_bb, b_bb)

    b_e = 1.0 / jnp.sqrt(dim)
    Ws, bs = [], []
    for e, out_e in enumerate(EXPERT_OUT):
        Ws.append(jax.random.uniform(ks[2 + 2 * e], (dim, out_e), jnp.float32, -b_e, b_e))
        bs.append(jax.random.uniform(ks[3 + 2 * e], (out_e,), jnp.float32, -b_e, b_e))
    We_cat = jnp.concatenate(Ws, axis=1)    # (dim, 18) — no padding columns
    be_cat = jnp.concatenate(bs)            # (18,)
    return Wb, bb, We_cat, be_cat


def reference(x, ds, label, Wb, bb, We_cat, be_cat):
    """Pure-JAX reference with the same bf16-operand / f32-accumulate matmul numerics."""
    B = x.shape[0]
    feat = jnp.dot(x.astype(jnp.bfloat16), Wb.astype(jnp.bfloat16),
                   preferred_element_type=jnp.float32) + bb[None, :]
    logits_all = jnp.dot(feat.astype(jnp.bfloat16), We_cat.astype(jnp.bfloat16),
                         preferred_element_type=jnp.float32) + be_cat[None, :]   # (B, 18)
    offsets = jnp.array(EXPERT_OFF, jnp.int32)
    widths = jnp.array(EXPERT_OUT, jnp.int32)
    low = offsets[ds]
    width = widths[ds]
    col = jnp.arange(N_OUT, dtype=jnp.int32)[None, :]
    sel = (col >= low[:, None]) & (col < (low + width)[:, None])
    lsel = jnp.where(sel, logits_all, NEG)
    pred = jnp.argmax(lsel, axis=-1).astype(jnp.int32) - low
    lse = jax.nn.logsumexp(lsel, axis=-1)
    picked = logits_all[jnp.arange(B), low + label]
    return pred, jnp.sum(lse - picked)


if __name__ == "__main__":
    # Small, 128-aligned feature dims; batch = 2 tiles of 128 (exercises grid / pipelining).
    B, D_IN, DIM = 256, 128, 128
    key = jax.random.PRNGKey(0)
    kx, kd, kl, kp = jax.random.split(key, 4)

    x = jax.random.normal(kx, (B, D_IN), jnp.float32)
    ds = jax.random.randint(kd, (B,), 0, N_EXPERTS, dtype=jnp.int32)
    widths = jnp.array(EXPERT_OUT, jnp.int32)
    # labels valid for the chosen expert (torch CE would error otherwise)
    label = jax.random.randint(kl, (B,), 0, max(EXPERT_OUT), dtype=jnp.int32) % widths[ds]
    Wb, bb, We_cat, be_cat = init_params(kp, D_IN, DIM)

    pred, loss = jax.jit(simple_moe_forward)(x, ds, label, Wb, bb, We_cat, be_cat)
    jax.block_until_ready((pred, loss))

    pred_ref, loss_ref = reference(x, ds, label, Wb, bb, We_cat, be_cat)
    assert jnp.array_equal(pred, pred_ref), (pred, pred_ref)
    assert jnp.allclose(loss, loss_ref, rtol=1e-4, atol=1e-2), (loss, loss_ref)

    print("KERNEL_OK")
</pallas_src>

<mosaic_0001>
module attributes {stable_mosaic.version = 11 : i64} {
  func.func @moe_kernel(%arg0: i32, %arg1: memref<128x128xf32, #tpu.memory_space<vmem>>, %arg2: memref<128x2xi32, #tpu.memory_space<vmem>>, %arg3: memref<128x128xbf16, #tpu.memory_space<vmem>>, %arg4: memref<1x128xf32, #tpu.memory_space<vmem>>, %arg5: memref<128x18xbf16, #tpu.memory_space<vmem>>, %arg6: memref<1x18xf32, #tpu.memory_space<vmem>>, %arg7: memref<128x1xi32, #tpu.memory_space<vmem>>, %arg8: memref<128x1xf32, #tpu.memory_space<vmem>>) attributes {dimension_semantics = [#tpu.dimension_semantics<parallel>], iteration_bounds = array<i64: 2>, scalar_prefetch = 0 : i64, scratch_operands = 0 : i64, tpu.core_type = #tpu.core_type<tc>, window_params = [{transform_indices = @transform_0, window_bounds = array<i64: 128, 128>}, {transform_indices = @transform_1, window_bounds = array<i64: 128, 2>}, {pipeline_mode = #tpu.pipeline_mode<synchronous>, transform_indices = @transform_2, window_bounds = array<i64: 128, 128>}, {pipeline_mode = #tpu.pipeline_mode<synchronous>, transform_indices = @transform_3, window_bounds = array<i64: 1, 128>}, {pipeline_mode = #tpu.pipeline_mode<synchronous>, transform_indices = @transform_4, window_bounds = array<i64: 128, 18>}, {pipeline_mode = #tpu.pipeline_mode<synchronous>, transform_indices = @transform_5, window_bounds = array<i64: 1, 18>}, {transform_indices = @transform_6, window_bounds = array<i64: 128, 1>}, {transform_indices = @transform_7, window_bounds = array<i64: 128, 1>}]} {
    %c0 = arith.constant 0 : index
    %c0_0 = arith.constant 0 : index
    %0 = vector.load %arg1[%c0, %c0_0] : memref<128x128xf32, #tpu.memory_space<vmem>>, vector<128x128xf32>
    %1 = arith.truncf %0 : vector<128x128xf32> to vector<128x128xbf16>
    %c0_1 = arith.constant 0 : index
    %c0_2 = arith.constant 0 : index
    %2 = vector.load %arg3[%c0_1, %c0_2] : memref<128x128xbf16, #tpu.memory_space<vmem>>, vector<128x128xbf16>
    %cst = arith.constant dense<0.000000e+00> : vector<128x128xf32>
    %3 = tpu.matmul %1, %2, %cst {dimension_numbers = #tpu.dot_dimension_numbers<[1], [0], [0], [1], [0, 0, 1, 1], [], []>} : vector<128x128xbf16>, vector<128x128xbf16>, vector<128x128xf32> -> vector<128x128xf32>
    %c0_3 = arith.constant 0 : index
    %c0_4 = arith.constant 0 : index
    %4 = vector.load %arg4[%c0_3, %c0_4] : memref<1x128xf32, #tpu.memory_space<vmem>>, vector<1x128xf32>
    %5 = vector.broadcast %4 : vector<1x128xf32> to vector<128x128xf32>
    %6 = arith.addf %3, %5 : vector<128x128xf32>
    %7 = arith.truncf %6 : vector<128x128xf32> to vector<128x128xbf16>
    %c0_5 = arith.constant 0 : index
    %c0_6 = arith.constant 0 : index
    %8 = vector.load %arg5[%c0_5, %c0_6] : memref<128x18xbf16, #tpu.memory_space<vmem>>, vector<128x18xbf16>
    %cst_7 = arith.constant dense<0.000000e+00> : vector<128x18xf32>
    %9 = tpu.matmul %7, %8, %cst_7 {dimension_numbers = #tpu.dot_dimension_numbers<[1], [0], [0], [1], [0, 0, 1, 1], [], []>} : vector<128x128xbf16>, vector<128x18xbf16>, vector<128x18xf32> -> vector<128x18xf32>
    %c0_8 = arith.constant 0 : index
    %c0_9 = arith.constant 0 : index
    %10 = vector.load %arg6[%c0_8, %c0_9] : memref<1x18xf32, #tpu.memory_space<vmem>>, vector<1x18xf32>
    %11 = vector.broadcast %10 : vector<1x18xf32> to vector<128x18xf32>
    %12 = arith.addf %9, %11 : vector<128x18xf32>
    %c0_10 = arith.constant 0 : index
    %c0_11 = arith.constant 0 : index
    %13 = vector.load %arg2[%c0_10, %c0_11] : memref<128x2xi32, #tpu.memory_space<vmem>>, vector<128x1xi32>
    %c0_12 = arith.constant 0 : index
    %c1 = arith.constant 1 : index
    %14 = vector.load %arg2[%c0_12, %c1] : memref<128x2xi32, #tpu.memory_space<vmem>>, vector<128x1xi32>
    %15 = tpu.iota {dimensions = array<i32: 1>} : vector<128x18xi32>
    %c0_i32 = arith.constant 0 : i32
    %16 = vector.broadcast %c0_i32 : i32 to vector<128x1xi32>
    %17 = arith.cmpi eq, %13, %16 : vector<128x1xi32>
    %c1_i32 = arith.constant 1 : i32
    %18 = vector.broadcast %c1_i32 : i32 to vector<128x1xi32>
    %19 = arith.cmpi eq, %13, %18 : vector<128x1xi32>
    %c10_i32 = arith.constant 10 : i32
    %c16_i32 = arith.constant 16 : i32
    %20 = vector.broadcast %c10_i32 : i32 to vector<128x1xi32>
    %21 = vector.broadcast %c16_i32 : i32 to vector<128x1xi32>
    %22 = arith.select %19, %20, %21 : vector<128x1xi1>, vector<128x1xi32>
    %c0_i32_13 = arith.constant 0 : i32
    %23 = vector.broadcast %c0_i32_13 : i32 to vector<128x1xi32>
    %24 = arith.select %17, %23, %22 : vector<128x1xi1>, vector<128x1xi32>
    %c0_i32_14 = arith.constant 0 : i32
    %25 = vector.broadcast %c0_i32_14 : i32 to vector<128x1xi32>
    %26 = arith.cmpi eq, %13, %25 : vector<128x1xi32>
    %c1_i32_15 = arith.constant 1 : i32
    %27 = vector.broadcast %c1_i32_15 : i32 to vector<128x1xi32>
    %28 = arith.cmpi eq, %13, %27 : vector<128x1xi32>
    %c6_i32 = arith.constant 6 : i32
    %c2_i32 = arith.constant 2 : i32
    %29 = vector.broadcast %c6_i32 : i32 to vector<128x1xi32>
    %30 = vector.broadcast %c2_i32 : i32 to vector<128x1xi32>
    %31 = arith.select %28, %29, %30 : vector<128x1xi1>, vector<128x1xi32>
    %c10_i32_16 = arith.constant 10 : i32
    %32 = vector.broadcast %c10_i32_16 : i32 to vector<128x1xi32>
    %33 = arith.select %26, %32, %31 : vector<128x1xi1>, vector<128x1xi32>
    %34 = vector.broadcast %24 : vector<128x1xi32> to vector<128x18xi32>
    %35 = arith.cmpi sge, %15, %34 : vector<128x18xi32>
    %36 = arith.addi %24, %33 : vector<128x1xi32>
    %37 = vector.broadcast %36 : vector<128x1xi32> to vector<128x18xi32>
    %38 = arith.cmpi slt, %15, %37 : vector<128x18xi32>
    %39 = arith.andi %35, %38 : vector<128x18xi1>
    %cst_17 = arith.constant -1.000000e+30 : f32
    %40 = vector.broadcast %cst_17 : f32 to vector<128x18xf32>
    %41 = arith.select %39, %12, %40 : vector<128x18xi1>, vector<128x18xf32>
    %cst_18 = arith.constant dense<0xFF800000> : vector<128xf32>
    %42 = vector.multi_reduction <maximumf>, %41, %cst_18 [1] : vector<128x18xf32> to vector<128xf32>
    %43 = vector.shape_cast %42 : vector<128xf32> to vector<128x1xf32>
    %44 = vector.broadcast %43 : vector<128x1xf32> to vector<128x18xf32>
    %45 = arith.cmpf oeq, %41, %44 : vector<128x18xf32>
    %c18_i32 = arith.constant 18 : i32
    %46 = vector.broadcast %c18_i32 : i32 to vector<128x18xi32>
    %47 = arith.select %45, %15, %46 : vector<128x18xi1>, vector<128x18xi32>
    %cst_19 = arith.constant dense<2147483647> : vector<128xi32>
    %48 = vector.multi_reduction <minsi>, %47, %cst_19 [1] : vector<128x18xi32> to vector<128xi32>
    %49 = vector.shape_cast %48 : vector<128xi32> to vector<128x1xi32>
    %50 = arith.subi %49, %24 : vector<128x1xi32>
    %c0_20 = arith.constant 0 : index
    %c0_21 = arith.constant 0 : index
    %51 = vector.load %arg7[%c0_20, %c0_21] : memref<128x1xi32, #tpu.memory_space<vmem>>, vector<128x1xi32>
    tpu.vector_store %arg7[%c0_20, %c0_21], %50 {strides = array<i32>} : memref<128x1xi32, #tpu.memory_space<vmem>>, vector<128x1xi32>,
    %52 = vector.broadcast %43 : vector<128x1xf32> to vector<128x18xf32>
    %53 = arith.subf %41, %52 : vector<128x18xf32>
    %54 = math.exp %53 : vector<128x18xf32>
    %cst_22 = arith.constant dense<0.000000e+00> : vector<128xf32>
    %55 = vector.multi_reduction <add>, %54, %cst_22 [1] : vector<128x18xf32> to vector<128xf32>
    %56 = vector.shape_cast %55 : vector<128xf32> to vector<128x1xf32>
    %57 = math.log %56 : vector<128x1xf32>
    %58 = arith.addf %43, %57 : vector<128x1xf32>
    %59 = arith.addi %24, %14 : vector<128x1xi32>
    %60 = vector.broadcast %59 : vector<128x1xi32> to vector<128x18xi32>
    %61 = arith.cmpi eq, %15, %60 : vector<128x18xi32>
    %cst_23 = arith.constant 0.000000e+00 : f32
    %62 = vector.broadcast %cst_23 : f32 to vector<128x18xf32>
    %63 = arith.select %61, %12, %62 : vector<128x18xi1>, vector<128x18xf32>
    %cst_24 = arith.constant dense<0.000000e+00> : vector<128xf32>
    %64 = vector.multi_reduction <add>, %63, %cst_24 [1] : vector<128x18xf32> to vector<128xf32>
    %65 = vector.shape_cast %64 : vector<128xf32> to vector<128x1xf32>
    %66 = arith.subf %58, %65 : vector<128x1xf32>
    %c0_25 = arith.constant 0 : index
    %c0_26 = arith.constant 0 : index
    %67 = vector.load %arg8[%c0_25, %c0_26] : memref<128x1xf32, #tpu.memory_space<vmem>>, vector<128x1xf32>
    tpu.vector_store %arg8[%c0_25, %c0_26], %66 {strides = array<i32>} : memref<128x1xf32, #tpu.memory_space<vmem>>, vector<128x1xf32>,
    return
  }
  func.func @transform_0(%arg0: i32) -> (i32, i32) {
    %c0_i32 = arith.constant 0 : i32
    %c0_i32_0 = arith.constant 0 : i32
    return %arg0, %c0_i32 : i32, i32
  }
  func.func @transform_1(%arg0: i32) -> (i32, i32) {
    %c0_i32 = arith.constant 0 : i32
    %c0_i32_0 = arith.constant 0 : i32
    return %arg0, %c0_i32 : i32, i32
  }
  func.func @transform_2(%arg0: i32) -> (i32, i32) {
    %c0_i32 = arith.constant 0 : i32
    %c0_i32_0 = arith.constant 0 : i32
    %c0_i32_1 = arith.constant 0 : i32
    return %c0_i32, %c0_i32_0 : i32, i32
  }
  func.func @transform_3(%arg0: i32) -> (i32, i32) {
    %c0_i32 = arith.constant 0 : i32
    %c0_i32_0 = arith.constant 0 : i32
    %c0_i32_1 = arith.constant 0 : i32
    return %c0_i32, %c0_i32_0 : i32, i32
  }
  func.func @transform_4(%arg0: i32) -> (i32, i32) {
    %c0_i32 = arith.constant 0 : i32
    %c0_i32_0 = arith.constant 0 : i32
    %c0_i32_1 = arith.constant 0 : i32
    return %c0_i32, %c0_i32_0 : i32, i32
  }
  func.func @transform_5(%arg0: i32) -> (i32, i32) {
    %c0_i32 = arith.constant 0 : i32
    %c0_i32_0 = arith.constant 0 : i32
    %c0_i32_1 = arith.constant 0 : i32
    return %c0_i32, %c0_i32_0 : i32, i32
  }
  func.func @transform_6(%arg0: i32) -> (i32, i32) {
    %c0_i32 = arith.constant 0 : i32
    %c0_i32_0 = arith.constant 0 : i32
    return %arg0, %c0_i32 : i32, i32
  }
  func.func @transform_7(%arg0: i32) -> (i32, i32) {
    %c0_i32 = arith.constant 0 : i32
    %c0_i32_0 = arith.constant 0 : i32
    return %arg0, %c0_i32 : i32, i32
  }
}

</mosaic_0001>

<llo_original>
// kernel: simple_moe_forward.1
$region0: #{simple_moe_forward.1}
  #allocation0 [shape = 'u32[]', space=smem, size = 0x4, offset = 0x4, fixed_abs, tag = 'smem constant byte address 0x4 - core index']
  #allocation1 [shape = 'u32[144,128]{1,0:T(1,128)}', space=vmem, size = 0x12000, scoped, tag = 'internal scratch']
  %s0 = inlined_call_operand.vmem [shape: f32[256,128], index: 0, kind: input, shape index: {}]
  %s1 = inlined_call_operand.vmem [shape: s32[256,2], index: 1, kind: input, shape index: {}]
  %s2 = inlined_call_operand.vmem [shape: bf16[128,128], index: 2, kind: input, shape index: {}]
  %s3 = inlined_call_operand.vmem [shape: f32[1,128], index: 3, kind: input, shape index: {}]
  %s4 = inlined_call_operand.vmem [shape: bf16[128,18], index: 4, kind: input, shape index: {}]
  %s5 = inlined_call_operand.vmem [shape: f32[1,18], index: 5, kind: input, shape index: {}]
  %s6 = inlined_call_operand.vmem [shape: s32[256,1], index: 6, kind: output, shape index: {0}]
  %s7 = inlined_call_operand.vmem [shape: f32[256,1], index: 7, kind: output, shape index: {1}]
  %8 = xla_tuple %s6, %s7
  %s9 = sld [smem:[#allocation0]]
  $region65: #{simple_moe_forward.1} parent=0
    _
  %s11 = ssub.s32 1, %s9
  %s12 = scalar_select 0, %s11, %s9
  loop: start=0, step=1, limit=4
  $region2: #{simple_moe_forward.1} parent=0 // loop_pre_header
    _
  $region3: #{simple_moe_forward.1} parent=0 // loop_header
    %s14 = sphi 0, %s18
    %p15 = scmp.ge.s32.totalorder %s14, 4
    %s24 = sphi 0, %s26
    %s27 = sphi 0, %s24
    %s28 = sphi 0, %s27
    %s44 = sphi 0, %s28
    %s50 = sphi 0, %s52
    %s53 = sphi 0, %s50
    %s54 = sphi 0, %s53
    %s70 = sphi 0, %s54
    %s74 = sphi 0, %s74
    %s76 = sphi 0, %s74
    %s77 = sphi 0, %s76
    %s91 = sphi 0, %s77
    %s95 = sphi 0, %s95
    %s97 = sphi 0, %s95
    %s98 = sphi 0, %s97
    %s112 = sphi 0, %s98
    %s116 = sphi 0, %s116
    %s118 = sphi 0, %s116
    %s119 = sphi 0, %s118
    %s133 = sphi 0, %s119
    %s137 = sphi 0, %s137
    %s139 = sphi 0, %s137
    %s140 = sphi 0, %s139
    %s154 = sphi 0, %s140
    %s160 = sphi 0, %s162
    %s163 = sphi 0, %s160
    %s164 = sphi 0, %s163
    %s180 = sphi 0, %s164
    %s186 = sphi 0, %s188
    %s189 = sphi 0, %s186
    %s190 = sphi 0, %s189
    %s206 = sphi 0, %s190
  $region4: #{simple_moe_forward.1} parent=0 // loop_header_branch
    %17 = sbr.rel (%p15) target = $region8
  $region5: #{simple_moe_forward.1} parent=0 // loop_body
    %s19 = ssub.s32 %s14, 1
    %s20 = ssub.s32 %s14, 2
    %s21 = sadd.s32 %s14, 1
    %s22 = ssub.s32 %s14, %s21
    %p23 = scmp.eq.s32.totalorder %s22, 0
    %s25 = sadd.s32 %s24, 1
    %s26 = scalar_select %p23, %s24, %s25
    %p29 = pneg %p23
    %p30 = scmp.eq.s32.totalorder %s14, 1
    %p31 = por %p29, %p30
    %p32 = scmp.ne.s32.totalorder %s24, %s27
    %p33 = scmp.eq.s32.totalorder %s14, 0
    %p34 = por %p32, %p33
    %p35 = scmp.ne.s32.totalorder %s24, %s27
    %p36 = scmp.eq.s32.totalorder %s19, 1
    %p37 = por %p35, %p36
    %p38 = scmp.ne.s32.totalorder %s27, %s28
    %p39 = scmp.eq.s32.totalorder %s19, 0
    %p40 = por %p38, %p39
    %p41 = scmp.ne.s32.totalorder %s27, %s28
    %p42 = scmp.eq.s32.totalorder %s20, 1
    %p43 = por %p41, %p42
    %p45 = scmp.ne.s32.totalorder %s28, %s44
    %p46 = scmp.eq.s32.totalorder %s20, 0
    %p47 = por %p45, %p46
    %s48 = ssub.s32 %s14, %s21
    %p49 = scmp.eq.s32.totalorder %s48, 0
    %s51 = sadd.s32 %s50, 1
    %s52 = scalar_select %p49, %s50, %s51
    %p55 = pneg %p49
    %p56 = scmp.eq.s32.totalorder %s14, 1
    %p57 = por %p55, %p56
    %p58 = scmp.ne.s32.totalorder %s50, %s53
    %p59 = scmp.eq.s32.totalorder %s14, 0
    %p60 = por %p58, %p59
    %p61 = scmp.ne.s32.totalorder %s50, %s53
    %p62 = scmp.eq.s32.totalorder %s19, 1
    %p63 = por %p61, %p62
    %p64 = scmp.ne.s32.totalorder %s53, %s54
    %p65 = scmp.eq.s32.totalorder %s19, 0
    %p66 = por %p64, %p65
    %p67 = scmp.ne.s32.totalorder %s53, %s54
    %p68 = scmp.eq.s32.totalorder %s20, 1
    %p69 = por %p67, %p68
    %p71 = scmp.ne.s32.totalorder %s54, %s70
    %p72 = scmp.eq.s32.totalorder %s20, 0
    %p73 = por %p71, %p72
    %s75 = sadd.s32 %s74, 1
    %p78 = scmp.eq.s32.totalorder %s14, 1
    %p79 = scmp.ne.s32.totalorder %s74, %s76
    %p80 = scmp.eq.s32.totalorder %s14, 0
    %p81 = por %p79, %p80
    %p82 = scmp.ne.s32.totalorder %s74, %s76
    %p83 = scmp.eq.s32.totalorder %s19, 1
    %p84 = por %p82, %p83
    %p85 = scmp.ne.s32.totalorder %s76, %s77
    %p86 = scmp.eq.s32.totalorder %s19, 0
    %p87 = por %p85, %p86
    %p88 = scmp.ne.s32.totalorder %s76, %s77
    %p89 = scmp.eq.s32.totalorder %s20, 1
    %p90 = por %p88, %p89
    %p92 = scmp.ne.s32.totalorder %s77, %s91
    %p93 = scmp.eq.s32.totalorder %s20, 0
    %p94 = por %p92, %p93
    %s96 = sadd.s32 %s95, 1
    %p99 = scmp.eq.s32.totalorder %s14, 1
    %p100 = scmp.ne.s32.totalorder %s95, %s97
    %p101 = scmp.eq.s32.totalorder %s14, 0
    %p102 = por %p100, %p101
    %p103 = scmp.ne.s32.totalorder %s95, %s97
    %p104 = scmp.eq.s32.totalorder %s19, 1
    %p105 = por %p103, %p104
    %p106 = scmp.ne.s32.totalorder %s97, %s98
    %p107 = scmp.eq.s32.totalorder %s19, 0
    %p108 = por %p106, %p107
    %p109 = scmp.ne.s32.totalorder %s97, %s98
    %p110 = scmp.eq.s32.totalorder %s20, 1
    %p111 = por %p109, %p110
    %p113 = scmp.ne.s32.totalorder %s98, %s112
    %p114 = scmp.eq.s32.totalorder %s20, 0
    %p115 = por %p113, %p114
    %s117 = sadd.s32 %s116, 1
    %p120 = scmp.eq.s32.totalorder %s14, 1
    %p121 = scmp.ne.s32.totalorder %s116, %s118
    %p122 = scmp.eq.s32.totalorder %s14, 0
    %p123 = por %p121, %p122
    %p124 = scmp.ne.s32.totalorder %s116, %s118
    %p125 = scmp.eq.s32.totalorder %s19, 1
    %p126 = por %p124, %p125
    %p127 = scmp.ne.s32.totalorder %s118, %s119
    %p128 = scmp.eq.s32.totalorder %s19, 0
    %p129 = por %p127, %p128
    %p130 = scmp.ne.s32.totalorder %s118, %s119
    %p131 = scmp.eq.s32.totalorder %s20, 1
    %p132 = por %p130, %p131
    %p134 = scmp.ne.s32.totalorder %s119, %s133
    %p135 = scmp.eq.s32.totalorder %s20, 0
    %p136 = por %p134, %p135
    %s138 = sadd.s32 %s137, 1
    %p141 = scmp.eq.s32.totalorder %s14, 1
    %p142 = scmp.ne.s32.totalorder %s137, %s139
    %p143 = scmp.eq.s32.totalorder %s14, 0
    %p144 = por %p142, %p143
    %p145 = scmp.ne.s32.totalorder %s137, %s139
    %p146 = scmp.eq.s32.totalorder %s19, 1
    %p147 = por %p145, %p146
    %p148 = scmp.ne.s32.totalorder %s139, %s140
    %p149 = scmp.eq.s32.totalorder %s19, 0
    %p150 = por %p148, %p149
    %p151 = scmp.ne.s32.totalorder %s139, %s140
    %p152 = scmp.eq.s32.totalorder %s20, 1
    %p153 = por %p151, %p152
    %p155 = scmp.ne.s32.totalorder %s140, %s154
    %p156 = scmp.eq.s32.totalorder %s20, 0
    %p157 = por %p155, %p156
    %s158 = ssub.s32 %s14, %s21
    %p159 = scmp.eq.s32.totalorder %s158, 0
    %s161 = sadd.s32 %s160, 1
    %s162 = scalar_select %p159, %s160, %s161
    %p165 = pneg %p159
    %p166 = scmp.eq.s32.totalorder %s14, 1
    %p167 = por %p165, %p166
    %p168 = scmp.ne.s32.totalorder %s160, %s163
    %p169 = scmp.eq.s32.totalorder %s14, 0
    %p170 = por %p168, %p169
    %p171 = scmp.ne.s32.totalorder %s160, %s163
    %p172 = scmp.eq.s32.totalorder %s19, 1
    %p173 = por %p171, %p172
    %p174 = scmp.ne.s32.totalorder %s163, %s164
    %p175 = scmp.eq.s32.totalorder %s19, 0
    %p176 = por %p174, %p175
    %p177 = scmp.ne.s32.totalorder %s163, %s164
    %p178 = scmp.eq.s32.totalorder %s20, 1
    %p179 = por %p177, %p178
    %p181 = scmp.ne.s32.totalorder %s164, %s180
    %p182 = scmp.eq.s32.totalorder %s20, 0
    %p183 = por %p181, %p182
    %s184 = ssub.s32 %s14, %s21
    %p185 = scmp.eq.s32.totalorder %s184, 0
    %s187 = sadd.s32 %s186, 1
    %s188 = scalar_select %p185, %s186, %s187
    %p191 = pneg %p185
    %p192 = scmp.eq.s32.totalorder %s14, 1
    %p193 = por %p191, %p192
    %p194 = scmp.ne.s32.totalorder %s186, %s189
    %p195 = scmp.eq.s32.totalorder %s14, 0
    %p196 = por %p194, %p195
    %p197 = scmp.ne.s32.totalorder %s186, %s189
    %p198 = scmp.eq.s32.totalorder %s19, 1
    %p199 = por %p197, %p198
    %p200 = scmp.ne.s32.totalorder %s189, %s190
    %p201 = scmp.eq.s32.totalorder %s19, 0
    %p202 = por %p200, %p201
    %p203 = scmp.ne.s32.totalorder %s189, %s190
    %p204 = scmp.eq.s32.totalorder %s20, 1
    %p205 = por %p203, %p204
    %p207 = scmp.ne.s32.totalorder %s190, %s206
    %p208 = scmp.eq.s32.totalorder %s20, 0
    %p209 = por %p207, %p208
    %p210 = scmp.le.s32.totalorder 1, %s14
    %p211 = scmp.lt.s32.totalorder %s14, 3
    %p212 = pnand %p210, %p211
    %p213 = pneg %p212
    // Predicated region
    $region9: #{simple_moe_forward.1} parent=5 // pred_check
      _
    $region10: #{simple_moe_forward.1} parent=5 // pred_check_branch
      %215 = sbr.rel (%p212) target = $region12
    $region11: #{simple_moe_forward.1} parent=5 // pred_region
      %s216 = ssub.s32 %s14, 1
      // Predicated region
      $region13: #{simple_moe_forward.1} parent=11 // pred_check
        %p217 = pneg %p87
      $region14: #{simple_moe_forward.1} parent=11 // pred_check_branch
        %219 = sbr.rel (%p217) target = $region16
      $region15: #{simple_moe_forward.1} parent=11 // pred_region
        _
      $region16: #{simple_moe_forward.1} parent=11 // pred_fallthru
        _
      // Predicated region
      $region17: #{simple_moe_forward.1} parent=11 // pred_check
        %p220 = pneg %p108
      $region18: #{simple_moe_forward.1} parent=11 // pred_check_branch
        %222 = sbr.rel (%p220) target = $region20
      $region19: #{simple_moe_forward.1} parent=11 // pred_region
        _
      $region20: #{simple_moe_forward.1} parent=11 // pred_fallthru
        _
      // Predicated region
      $region21: #{simple_moe_forward.1} parent=11 // pred_check
        %p223 = pneg %p129
      $region22: #{simple_moe_forward.1} parent=11 // pred_check_branch
        %225 = sbr.rel (%p223) target = $region24
      $region23: #{simple_moe_forward.1} parent=11 // pred_region
        _
      $region24: #{simple_moe_forward.1} parent=11 // pred_fallthru
        _
      // Predicated region
      $region25: #{simple_moe_forward.1} parent=11 // pred_check
        %p226 = pneg %p150
      $region26: #{simple_moe_forward.1} parent=11 // pred_check_branch
        %228 = sbr.rel (%p226) target = $region28
      $region27: #{simple_moe_forward.1} parent=11 // pred_region
        _
      $region28: #{simple_moe_forward.1} parent=11 // pred_fallthru
        _
    $region12: #{simple_moe_forward.1} parent=5 // pred_fallthru
      _
    %p229 = scmp.lt.s32.totalorder %s14, 2
    // Predicated region
    $region29: #{simple_moe_forward.1} parent=5 // pred_check
      %p230 = pneg %p229
    $region30: #{simple_moe_forward.1} parent=5 // pred_check_branch
      %232 = sbr.rel (%p230) target = $region32
    $region31: #{simple_moe_forward.1} parent=5 // pred_region
      // Predicated region
      $region33: #{simple_moe_forward.1} parent=31 // pred_check
        %p233 = pneg %p34
      $region34: #{simple_moe_forward.1} parent=31 // pred_check_branch
        %235 = sbr.rel (%p233) target = $region36
      $region35: #{simple_moe_forward.1} parent=31 // pred_region
        %s236 = smul.u32 16, %s14
        %p237 = scmp.lt.s32.totalorder %s236, 31
        %s238 = scalar_select %p237, %s236, 31
        %s239 = smul.addr %s238, 8
        %s240 = scalar_lea.vmem %s0, %s239
        %s241 = smul.u32 16, %s14
      $region36: #{simple_moe_forward.1} parent=31 // pred_fallthru
        _
      // Predicated region
      $region37: #{simple_moe_forward.1} parent=31 // pred_check
        %p242 = pneg %p60
      $region38: #{simple_moe_forward.1} parent=31 // pred_check_branch
        %244 = sbr.rel (%p242) target = $region40
      $region39: #{simple_moe_forward.1} parent=31 // pred_region
        %s245 = smul.u32 16, %s14
        %p246 = scmp.lt.s32.totalorder %s245, 31
        %s247 = scalar_select %p246, %s245, 31
        %s248 = smul.addr %s247, 8
        %s249 = scalar_lea.vmem %s1, %s248
        %s250 = smul.u32 16, %s14
      $region40: #{simple_moe_forward.1} parent=31 // pred_fallthru
        _
    $region32: #{simple_moe_forward.1} parent=5 // pred_fallthru
      _
    %p251 = scmp.le.s32.totalorder 1, %s14
    %p252 = scmp.lt.s32.totalorder %s14, 3
    %p253 = pnand %p251, %p252
    %p254 = pneg %p253
    // Predicated region
    $region41: #{simple_moe_forward.1} parent=5 // pred_check
      _
    $region42: #{simple_moe_forward.1} parent=5 // pred_check_branch
      %256 = sbr.rel (%p253) target = $region44
    $region43: #{simple_moe_forward.1} parent=5 // pred_region
      %s257 = ssub.s32 %s14, 1
      %s258 = smul.u32 16, %s19
      %p259 = scmp.lt.s32.totalorder %s258, 31
      %s260 = scalar_select %p259, %s258, 31
      %s261 = smul.addr %s260, 8
      %s262 = scalar_lea.vmem %s0, %s261
      %p263 = pneg %p40
      %p264 = pneg %p37
      %s265 = smul.u32 16, %s19
      %p266 = scmp.lt.s32.totalorder %s265, 31
      %s267 = scalar_select %p266, %s265, 31
      %s268 = smul.addr %s267, 8
      %s269 = scalar_lea.vmem %s1, %s268
      %p270 = pneg %p66
      %p271 = pneg %p63
      %p272 = pneg %p87
      %p273 = pneg %p84
      %p274 = pneg %p108
      %p275 = pneg %p105
      %p276 = pneg %p129
      %p277 = pneg %p126
      %p278 = pneg %p150
      %p279 = pneg %p147
      %p280 = pneg %p176
      %p281 = pneg %p173
      %s282 = smul.u32 16, %s19
      %p283 = scmp.lt.s32.totalorder %s282, 31
      %s284 = scalar_select %p283, %s282, 31
      %s285 = smul.addr %s284, 8
      %s286 = scalar_lea.vmem %s6, %s285
      %p287 = pneg %p202
      %p288 = pneg %p199
      %s289 = smul.u32 16, %s19
      %p290 = scmp.lt.s32.totalorder %s289, 31
      %s291 = scalar_select %p290, %s289, 31
      %s292 = smul.addr %s291, 8
      %s293 = scalar_lea.vmem %s7, %s292
      %s294 = smul.u32 16, %s19
      %p295 = scmp.lt.s32.totalorder %s294, 31
      %s296 = scalar_select %p295, %s294, 31
      %s297 = smul.addr %s296, 8
      %s298 = scalar_lea.vmem %s0, %s297
      %s299 = smul.u32 16, %s19
      %s300 = smul.u32 16, %s19
      %p301 = scmp.lt.s32.totalorder %s300, 31
      %s302 = scalar_select %p301, %s300, 31
      %s303 = smul.addr %s302, 8
      %s304 = scalar_lea.vmem %s1, %s303
      %s305 = smul.u32 16, %s19
      %s306 = smul.u32 16, %s19
      %p307 = scmp.lt.s32.totalorder %s306, 31
      %s308 = scalar_select %p307, %s306, 31
      %s309 = smul.addr %s308, 8
      %s310 = scalar_lea.vmem %s6, %s309
      %s311 = smul.u32 16, %s19
      %s312 = smul.u32 16, %s19
      %p313 = scmp.lt.s32.totalorder %s312, 31
      %s314 = scalar_select %p313, %s312, 31
      %s315 = smul.addr %s314, 8
      %s316 = scalar_lea.vmem %s7, %s315
      %s317 = smul.u32 16, %s19
      %v319 = vld [vmem:[%s298] sm:$0xff]
      %v320 = vld [vmem:[%s298 + $0x8] sm:$0xff]
      %v321 = vld [vmem:[%s298 + $0x10] sm:$0xff]
      %v322 = vld [vmem:[%s298 + $0x18] sm:$0xff]
      %v323 = vld [vmem:[%s298 + $0x20] sm:$0xff]
      %v324 = vld [vmem:[%s298 + $0x28] sm:$0xff]
      %v325 = vld [vmem:[%s298 + $0x30] sm:$0xff]
      %v326 = vld [vmem:[%s298 + $0x38] sm:$0xff]
      %v327 = vld [vmem:[%s298 + $0x40] sm:$0xff]
      %v328 = vld [vmem:[%s298 + $0x48] sm:$0xff]
      %v329 = vld [vmem:[%s298 + $0x50] sm:$0xff]
      %v330 = vld [vmem:[%s298 + $0x58] sm:$0xff]
      %v331 = vld [vmem:[%s298 + $0x60] sm:$0xff]
      %v332 = vld [vmem:[%s298 + $0x68] sm:$0xff]
      %v333 = vld [vmem:[%s298 + $0x70] sm:$0xff]
      %v334 = vld [vmem:[%s298 + $0x78] sm:$0xff]
      %v335 = vpack.c.bf16 %v320, %v319
      %v336 = vpack.c.bf16 %v322, %v321
      %v337 = vpack.c.bf16 %v324, %v323
      %v338 = vpack.c.bf16 %v326, %v325
      %v339 = vpack.c.bf16 %v328, %v327
      %v340 = vpack.c.bf16 %v330, %v329
      %v341 = vpack.c.bf16 %v332, %v331
      %v342 = vpack.c.bf16 %v334, %v333
      %v343 = vld [vmem:[%s2] sm:$0xf]
      %v344 = vld [vmem:[%s2 + $0x4] sm:$0xf]
      %v345 = vld [vmem:[%s2 + $0x8] sm:$0xf]
      %v346 = vld [vmem:[%s2 + $0xc] sm:$0xf]
      %v347 = vld [vmem:[%s2 + $0x10] sm:$0xf]
      %v348 = vld [vmem:[%s2 + $0x14] sm:$0xf]
      %v349 = vld [vmem:[%s2 + $0x18] sm:$0xf]
      %v350 = vld [vmem:[%s2 + $0x1c] sm:$0xf]
      %v351 = vld [vmem:[%s2 + $0x20] sm:$0xf]
      %v352 = vld [vmem:[%s2 + $0x24] sm:$0xf]
      %v353 = vld [vmem:[%s2 + $0x28] sm:$0xf]
      %v354 = vld [vmem:[%s2 + $0x2c] sm:$0xf]
      %v355 = vld [vmem:[%s2 + $0x30] sm:$0xf]
      %v356 = vld [vmem:[%s2 + $0x34] sm:$0xf]
      %v357 = vld [vmem:[%s2 + $0x38] sm:$0xf]
      %v358 = vld [vmem:[%s2 + $0x3c] sm:$0xf]
      %v359 = vld [vmem:[%s3] sm:$0x1]
      %v361 = vlaneseq
      %v362 = vshrl.u32 %v361, 7
      %v363 = vsub.s32 0, %v362
      %v364 = vrot.slane %v359, %v363
      %v382 = vunpack.c.l.b16 %v343
      %v383 = vunpack.c.l.b16 %v344
      %v384 = vunpack.c.l.b16 %v345
      %v385 = vunpack.c.l.b16 %v346
      %v386 = vunpack.c.l.b16 %v347
      %v387 = vunpack.c.l.b16 %v348
      %v388 = vunpack.c.l.b16 %v349
      %v389 = vunpack.c.l.b16 %v350
      %v390 = vunpack.c.l.b16 %v351
      %v391 = vunpack.c.l.b16 %v352
      %v392 = vunpack.c.l.b16 %v353
      %v393 = vunpack.c.l.b16 %v354
      %v394 = vunpack.c.l.b16 %v355
      %v395 = vunpack.c.l.b16 %v356
      %v396 = vunpack.c.l.b16 %v357
      %v397 = vunpack.c.l.b16 %v358
      %v398 = vpack.c.b16 %v383, %v382
      %v399 = vpack.c.b16 %v385, %v384
      %v400 = vpack.c.b16 %v387, %v386
      %v401 = vpack.c.b16 %v389, %v388
      %v402 = vpack.c.b16 %v391, %v390
      %v403 = vpack.c.b16 %v393, %v392
      %v404 = vpack.c.b16 %v395, %v394
      %v405 = vpack.c.b16 %v397, %v396
      %414 = vmatprep.subr.bf16.mxu0 0
      %415 = vmatpush1.bf16.msra.mxu0 %v398
      %416 = vmatprep.subr.bf16.mxu0 0
      %417 = vmatpush1.bf16.msra.mxu0 %v399
      %418 = vmatprep.subr.bf16.mxu0 0
      %419 = vmatpush1.bf16.msra.mxu0 %v400
      %420 = vmatprep.subr.bf16.mxu0 0
      %421 = vmatpush1.bf16.msra.mxu0 %v401
      %422 = vmatprep.subr.bf16.mxu0 0
      %423 = vmatpush1.bf16.msra.mxu0 %v402
      %424 = vmatprep.subr.bf16.mxu0 0
      %425 = vmatpush1.bf16.msra.mxu0 %v403
      %426 = vmatprep.subr.bf16.mxu0 0
      %427 = vmatpush1.bf16.msra.mxu0 %v404
      %428 = vmatprep.subr.bf16.mxu0 0
      %429 = vmatpush1.bf16.msra.mxu0 %v405
      %430 = vmatprep.subr.bf16.mxu0 0
      %431 = vmatpush1.bf16.msra.mxu0 0
      %432 = vmatprep.subr.bf16.mxu0 0
      %433 = vmatpush1.bf16.msra.mxu0 0
      %434 = vmatprep.subr.bf16.mxu0 0
      %435 = vmatpush1.bf16.msra.mxu0 0
      %436 = vmatprep.subr.bf16.mxu0 0
      %437 = vmatpush1.bf16.msra.mxu0 0
      %438 = vmatprep.subr.bf16.mxu0 0
      %439 = vmatpush1.bf16.msra.mxu0 0
      %440 = vmatprep.subr.bf16.mxu0 0
      %441 = vmatpush1.bf16.msra.mxu0 0
      %442 = vmatprep.subr.bf16.mxu0 0
      %443 = vmatpush1.bf16.msra.mxu0 0
      %444 = vmatprep.subr.bf16.mxu0 0
      %445 = vmatpush1.bf16.msra.mxu0 0
      %446 = vmatprep.mubr.bf16.mxu0 0
      %447 = vmatmul.mubr.bf16.gmra.mrb[0].mxu0 %v335
      %v448 = vpop.f32.mrb[0].mxu0
      %v449 = vadd.f32 %v364, %v448
      %v450 = vpop.f32.mrb[0].mxu0
      %v451 = vpop.f32.mrb[0].mxu0
      %v452 = vadd.f32 %v364, %v451
      %v453 = vpop.f32.mrb[0].mxu0
      %454 = vmatprep.mubr.bf16.mxu0 0
      %455 = vmatmul.mubr.bf16.gmra.mrb[0].mxu0 %v336
      %v456 = vpop.f32.mrb[0].mxu0
      %v457 = vadd.f32 %v364, %v456
      %v458 = vpop.f32.mrb[0].mxu0
      %v459 = vpop.f32.mrb[0].mxu0
      %v460 = vadd.f32 %v364, %v459
      %v461 = vpop.f32.mrb[0].mxu0
      %462 = vmatprep.mubr.bf16.mxu0 0
      %463 = vmatmul.mubr.bf16.gmra.mrb[0].mxu0 %v337
      %v464 = vpop.f32.mrb[0].mxu0
      %v465 = vadd.f32 %v364, %v464
      %v466 = vpop.f32.mrb[0].mxu0
      %v467 = vpop.f32.mrb[0].mxu0
      %v468 = vadd.f32 %v364, %v467
      %v469 = vpop.f32.mrb[0].mxu0
      %470 = vmatprep.mubr.bf16.mxu0 0
      %471 = vmatmul.mubr.bf16.gmra.mrb[0].mxu0 %v338
      %v472 = vpop.f32.mrb[0].mxu0
      %v473 = vadd.f32 %v364, %v472
      %v474 = vpop.f32.mrb[0].mxu0
      %v475 = vpop.f32.mrb[0].mxu0
      %v476 = vadd.f32 %v364, %v475
      %v477 = vpop.f32.mrb[0].mxu0
      %478 = vmatprep.mubr.bf16.mxu0 0
      %479 = vmatmul.mubr.bf16.gmra.mrb[0].mxu0 %v339
      %v480 = vpop.f32.mrb[0].mxu0
      %v481 = vadd.f32 %v364, %v480
      %v482 = vpop.f32.mrb[0].mxu0
      %v483 = vpop.f32.mrb[0].mxu0
      %v484 = vadd.f32 %v364, %v483
      %v485 = vpop.f32.mrb[0].mxu0
      %486 = vmatprep.mubr.bf16.mxu0 0
      %487 = vmatmul.mubr.bf16.gmra.mrb[0].mxu0 %v340
      %v488 = vpop.f32.mrb[0].mxu0
      %v489 = vadd.f32 %v364, %v488
      %v490 = vpop.f32.mrb[0].mxu0
      %v491 = vpop.f32.mrb[0].mxu0
      %v492 = vadd.f32 %v364, %v491
      %v493 = vpop.f32.mrb[0].mxu0
      %494 = vmatprep.mubr.bf16.mxu0 0
      %495 = vmatmul.mubr.bf16.gmra.mrb[0].mxu0 %v341
      %v496 = vpop.f32.mrb[0].mxu0
      %v497 = vadd.f32 %v364, %v496
      %v498 = vpop.f32.mrb[0].mxu0
      %v499 = vpop.f32.mrb[0].mxu0
      %v500 = vadd.f32 %v364, %v499
      %v501 = vpop.f32.mrb[0].mxu0
      %502 = vmatprep.mubr.bf16.mxu0 0
      %503 = vmatmul.mubr.bf16.gmra.mrb[0].mxu0 %v342
      %v504 = vpop.f32.mrb[0].mxu0
      %v505 = vadd.f32 %v364, %v504
      %v506 = vpop.f32.mrb[0].mxu0
      %v507 = vpop.f32.mrb[0].mxu0
      %v508 = vadd.f32 %v364, %v507
      %v509 = vpop.f32.mrb[0].mxu0
      %510 = vdwg.mxu0
      %v511 = vpack.c.bf16 %v452, %v449
      %v512 = vpack.c.bf16 %v460, %v457
      %v513 = vpack.c.bf16 %v468, %v465
      %v514 = vpack.c.bf16 %v476, %v473
      %v515 = vpack.c.bf16 %v484, %v481
      %v516 = vpack.c.bf16 %v492, %v489
      %v517 = vpack.c.bf16 %v500, %v497
      %v518 = vpack.c.bf16 %v508, %v505
      %v519 = vld [vmem:[%s4] sm:$0xf]
      %v520 = vld [vmem:[%s4 + $0x4] sm:$0xf]
      %v521 = vld [vmem:[%s4 + $0x8] sm:$0xf]
      %v522 = vld [vmem:[%s4 + $0xc] sm:$0xf]
      %v523 = vld [vmem:[%s4 + $0x10] sm:$0xf]
      %v524 = vld [vmem:[%s4 + $0x14] sm:$0xf]
      %v525 = vld [vmem:[%s4 + $0x18] sm:$0xf]
      %v526 = vld [vmem:[%s4 + $0x1c] sm:$0xf]
      %v527 = vld [vmem:[%s4 + $0x20] sm:$0xf]
      %v528 = vld [vmem:[%s4 + $0x24] sm:$0xf]
      %v529 = vld [vmem:[%s4 + $0x28] sm:$0xf]
      %v530 = vld [vmem:[%s4 + $0x2c] sm:$0xf]
      %v531 = vld [vmem:[%s4 + $0x30] sm:$0xf]
      %v532 = vld [vmem:[%s4 + $0x34] sm:$0xf]
      %v533 = vld [vmem:[%s4 + $0x38] sm:$0xf]
      %v534 = vld [vmem:[%s4 + $0x3c] sm:$0xf]
      %v535 = vld [vmem:[%s5] sm:$0x1]
      %v537 = vlaneseq
      %v538 = vshrl.u32 %v537, 7
      %v539 = vsub.s32 0, %v538
      %v540 = vrot.slane %v535, %v539
      %v558 = vunpack.c.l.b16 %v519
      %v559 = vunpack.c.l.b16 %v520
      %v560 = vunpack.c.l.b16 %v521
      %v561 = vunpack.c.l.b16 %v522
      %v562 = vunpack.c.l.b16 %v523
      %v563 = vunpack.c.l.b16 %v524
      %v564 = vunpack.c.l.b16 %v525
      %v565 = vunpack.c.l.b16 %v526
      %v566 = vunpack.c.l.b16 %v527
      %v567 = vunpack.c.l.b16 %v528
      %v568 = vunpack.c.l.b16 %v529
      %v569 = vunpack.c.l.b16 %v530
      %v570 = vunpack.c.l.b16 %v531
      %v571 = vunpack.c.l.b16 %v532
      %v572 = vunpack.c.l.b16 %v533
      %v573 = vunpack.c.l.b16 %v534
      %v574 = vpack.c.b16 %v559, %v558
      %v575 = vpack.c.b16 %v561, %v560
      %v576 = vpack.c.b16 %v563, %v562
      %v577 = vpack.c.b16 %v565, %v564
      %v578 = vpack.c.b16 %v567, %v566
      %v579 = vpack.c.b16 %v569, %v568
      %v580 = vpack.c.b16 %v571, %v570
      %v581 = vpack.c.b16 %v573, %v572
      %590 = vmatprep.subr.bf16.mxu0 0
      %591 = vmatpush1.bf16.msra.mxu0 %v574
      %592 = vmatprep.subr.bf16.mxu0 0
      %593 = vmatpush1.bf16.msra.mxu0 %v575
      %594 = vmatprep.subr.bf16.mxu0 0
      %595 = vmatpush1.bf16.msra.mxu0 %v576
      %596 = vmatprep.subr.bf16.mxu0 0
      %597 = vmatpush1.bf16.msra.mxu0 %v577
      %598 = vmatprep.subr.bf16.mxu0 0
      %599 = vmatpush1.bf16.msra.mxu0 %v578
      %600 = vmatprep.subr.bf16.mxu0 0
      %601 = vmatpush1.bf16.msra.mxu0 %v579
      %602 = vmatprep.subr.bf16.mxu0 0
      %603 = vmatpush1.bf16.msra.mxu0 %v580
      %604 = vmatprep.subr.bf16.mxu0 0
      %605 = vmatpush1.bf16.msra.mxu0 %v581
      %606 = vmatprep.subr.bf16.mxu0 0
      %607 = vmatpush1.bf16.msra.mxu0 0
      %608 = vmatprep.subr.bf16.mxu0 0
      %609 = vmatpush1.bf16.msra.mxu0 0
      %610 = vmatprep.subr.bf16.mxu0 0
      %611 = vmatpush1.bf16.msra.mxu0 0
      %612 = vmatprep.subr.bf16.mxu0 0
      %613 = vmatpush1.bf16.msra.mxu0 0
      %614 = vmatprep.subr.bf16.mxu0 0
      %615 = vmatpush1.bf16.msra.mxu0 0
      %616 = vmatprep.subr.bf16.mxu0 0
      %617 = vmatpush1.bf16.msra.mxu0 0
      %618 = vmatprep.subr.bf16.mxu0 0
      %619 = vmatpush1.bf16.msra.mxu0 0
      %620 = vmatprep.subr.bf16.mxu0 0
      %621 = vmatpush1.bf16.msra.mxu0 0
      %622 = vmatprep.mubr.bf16.mxu0 0
      %623 = vmatmul.mubr.bf16.gmra.mrb[0].mxu0 %v511
      %v624 = vpop.f32.mrb[0].mxu0
      %v625 = vadd.f32 %v540, %v624
      %v626 = vpop.f32.mrb[0].mxu0
      %v627 = vpop.f32.mrb[0].mxu0
      %v628 = vadd.f32 %v540, %v627
      %v629 = vpop.f32.mrb[0].mxu0
      %630 = vmatprep.mubr.bf16.mxu0 0
      %631 = vmatmul.mubr.bf16.gmra.mrb[0].mxu0 %v512
      %v632 = vpop.f32.mrb[0].mxu0
      %v633 = vadd.f32 %v540, %v632
      %v634 = vpop.f32.mrb[0].mxu0
      %v635 = vpop.f32.mrb[0].mxu0
      %v636 = vadd.f32 %v540, %v635
      %v637 = vpop.f32.mrb[0].mxu0
      %638 = vmatprep.mubr.bf16.mxu0 0
      %639 = vmatmul.mubr.bf16.gmra.mrb[0].mxu0 %v513
      %v640 = vpop.f32.mrb[0].mxu0
      %v641 = vadd.f32 %v540, %v640
      %v642 = vpop.f32.mrb[0].mxu0
      %v643 = vpop.f32.mrb[0].mxu0
      %v644 = vadd.f32 %v540, %v643
      %v645 = vpop.f32.mrb[0].mxu0
      %646 = vmatprep.mubr.bf16.mxu0 0
      %647 = vmatmul.mubr.bf16.gmra.mrb[0].mxu0 %v514
      %v648 = vpop.f32.mrb[0].mxu0
      %v649 = vadd.f32 %v540, %v648
      %v650 = vpop.f32.mrb[0].mxu0
      %v651 = vpop.f32.mrb[0].mxu0
      %v652 = vadd.f32 %v540, %v651
      %v653 = vpop.f32.mrb[0].mxu0
      %654 = vmatprep.mubr.bf16.mxu0 0
      %655 = vmatmul.mubr.bf16.gmra.mrb[0].mxu0 %v515
      %v656 = vpop.f32.mrb[0].mxu0
      %v657 = vadd.f32 %v540, %v656
      %v658 = vpop.f32.mrb[0].mxu0
      %v659 = vpop.f32.mrb[0].mxu0
      %v660 = vadd.f32 %v540, %v659
      %v661 = vpop.f32.mrb[0].mxu0
      %662 = vmatprep.mubr.bf16.mxu0 0
      %663 = vmatmul.mubr.bf16.gmra.mrb[0].mxu0 %v516
      %v664 = vpop.f32.mrb[0].mxu0
      %v665 = vadd.f32 %v540, %v664
      %v666 = vpop.f32.mrb[0].mxu0
      %v667 = vpop.f32.mrb[0].mxu0
      %v668 = vadd.f32 %v540, %v667
      %v669 = vpop.f32.mrb[0].mxu0
      %670 = vmatprep.mubr.bf16.mxu0 0
      %671 = vmatmul.mubr.bf16.gmra.mrb[0].mxu0 %v517
      %v672 = vpop.f32.mrb[0].mxu0
      %v673 = vadd.f32 %v540, %v672
      %v674 = vpop.f32.mrb[0].mxu0
      %v675 = vpop.f32.mrb[0].mxu0
      %v676 = vadd.f32 %v540, %v675
      %v677 = vpop.f32.mrb[0].mxu0
      %678 = vmatprep.mubr.bf16.mxu0 0
      %679 = vmatmul.mubr.bf16.gmra.mrb[0].mxu0 %v518
      %v680 = vpop.f32.mrb[0].mxu0
      %v681 = vadd.f32 %v540, %v680
      %v682 = vpop.f32.mrb[0].mxu0
      %v683 = vpop.f32.mrb[0].mxu0
      %v684 = vadd.f32 %v540, %v683
      %v685 = vpop.f32.mrb[0].mxu0
      %686 = vdwg.mxu0
      %v687 = vld [vmem:[%s304] sm:$0xff]
      %v688 = vld [vmem:[%s304 + $0x8] sm:$0xff]
      %v689 = vld [vmem:[%s304 + $0x10] sm:$0xff]
      %v690 = vld [vmem:[%s304 + $0x18] sm:$0xff]
      %v691 = vld [vmem:[%s304 + $0x20] sm:$0xff]
      %v692 = vld [vmem:[%s304 + $0x28] sm:$0xff]
      %v693 = vld [vmem:[%s304 + $0x30] sm:$0xff]
      %v694 = vld [vmem:[%s304 + $0x38] sm:$0xff]
      %v695 = vld [vmem:[%s304 + $0x40] sm:$0xff]
      %v696 = vld [vmem:[%s304 + $0x48] sm:$0xff]
      %v697 = vld [vmem:[%s304 + $0x50] sm:$0xff]
      %v698 = vld [vmem:[%s304 + $0x58] sm:$0xff]
      %v699 = vld [vmem:[%s304 + $0x60] sm:$0xff]
      %v700 = vld [vmem:[%s304 + $0x68] sm:$0xff]
      %v701 = vld [vmem:[%s304 + $0x70] sm:$0xff]
      %v702 = vld [vmem:[%s304 + $0x78] sm:$0xff]
      %v703 = vlaneseq
      %v704 = vand.u32 %v703, 127
      %vm705 = vcmp.eq.s32.totalorder %v687, 0
      %vm706 = vcmp.eq.s32.totalorder %v688, 0
      %vm707 = vcmp.eq.s32.totalorder %v689, 0
      %vm708 = vcmp.eq.s32.totalorder %v690, 0
      %vm709 = vcmp.eq.s32.totalorder %v691, 0
      %vm710 = vcmp.eq.s32.totalorder %v692, 0
      %vm711 = vcmp.eq.s32.totalorder %v693, 0
      %vm712 = vcmp.eq.s32.totalorder %v694, 0
      %vm713 = vcmp.eq.s32.totalorder %v695, 0
      %vm714 = vcmp.eq.s32.totalorder %v696, 0
      %vm715 = vcmp.eq.s32.totalorder %v697, 0
      %vm716 = vcmp.eq.s32.totalorder %v698, 0
      %vm717 = vcmp.eq.s32.totalorder %v699, 0
      %vm718 = vcmp.eq.s32.totalorder %v700, 0
      %vm719 = vcmp.eq.s32.totalorder %v701, 0
      %vm720 = vcmp.eq.s32.totalorder %v702, 0
      %vm721 = vcmp.eq.s32.totalorder %v687, 1
      %vm722 = vcmp.eq.s32.totalorder %v688, 1
      %vm723 = vcmp.eq.s32.totalorder %v689, 1
      %vm724 = vcmp.eq.s32.totalorder %v690, 1
      %vm725 = vcmp.eq.s32.totalorder %v691, 1
      %vm726 = vcmp.eq.s32.totalorder %v692, 1
      %vm727 = vcmp.eq.s32.totalorder %v693, 1
      %vm728 = vcmp.eq.s32.totalorder %v694, 1
      %vm729 = vcmp.eq.s32.totalorder %v695, 1
      %vm730 = vcmp.eq.s32.totalorder %v696, 1
      %vm731 = vcmp.eq.s32.totalorder %v697, 1
      %vm732 = vcmp.eq.s32.totalorder %v698, 1
      %vm733 = vcmp.eq.s32.totalorder %v699, 1
      %vm734 = vcmp.eq.s32.totalorder %v700, 1
      %vm735 = vcmp.eq.s32.totalorder %v701, 1
      %vm736 = vcmp.eq.s32.totalorder %v702, 1
      %v737 = vsel %vm721, 10, 16
      %v738 = vsel %vm722, 10, 16
      %v739 = vsel %vm723, 10, 16
      %v740 = vsel %vm724, 10, 16
      %v741 = vsel %vm725, 10, 16
      %v742 = vsel %vm726, 10, 16
      %v743 = vsel %vm727, 10, 16
      %v744 = vsel %vm728, 10, 16
      %v745 = vsel %vm729, 10, 16
      %v746 = vsel %vm730, 10, 16
      %v747 = vsel %vm731, 10, 16
      %v748 = vsel %vm732, 10, 16
      %v749 = vsel %vm733, 10, 16
      %v750 = vsel %vm734, 10, 16
      %v751 = vsel %vm735, 10, 16
      %v752 = vsel %vm736, 10, 16
      %v753 = vsel %vm705, 0, %v737
      %v754 = vsel %vm706, 0, %v738
      %v755 = vsel %vm707, 0, %v739
      %v756 = vsel %vm708, 0, %v740
      %v757 = vsel %vm709, 0, %v741
      %v758 = vsel %vm710, 0, %v742
      %v759 = vsel %vm711, 0, %v743
      %v760 = vsel %vm712, 0, %v744
      %v761 = vsel %vm713, 0, %v745
      %v762 = vsel %vm714, 0, %v746
      %v763 = vsel %vm715, 0, %v747
      %v764 = vsel %vm716, 0, %v748
      %v765 = vsel %vm717, 0, %v749
      %v766 = vsel %vm718, 0, %v750
      %v767 = vsel %vm719, 0, %v751
      %v768 = vsel %vm720, 0, %v752
      %v769 = vsel %vm721, 6, 2
      %v770 = vsel %vm722, 6, 2
      %v771 = vsel %vm723, 6, 2
      %v772 = vsel %vm724, 6, 2
      %v773 = vsel %vm725, 6, 2
      %v774 = vsel %vm726, 6, 2
      %v775 = vsel %vm727, 6, 2
      %v776 = vsel %vm728, 6, 2
      %v777 = vsel %vm729, 6, 2
      %v778 = vsel %vm730, 6, 2
      %v779 = vsel %vm731, 6, 2
      %v780 = vsel %vm732, 6, 2
      %v781 = vsel %vm733, 6, 2
      %v782 = vsel %vm734, 6, 2
      %v783 = vsel %vm735, 6, 2
      %v784 = vsel %vm736, 6, 2
      %v785 = vsel %vm705, 10, %v769
      %v786 = vsel %vm706, 10, %v770
      %v787 = vsel %vm707, 10, %v771
      %v788 = vsel %vm708, 10, %v772
      %v789 = vsel %vm709, 10, %v773
      %v790 = vsel %vm710, 10, %v774
      %v791 = vsel %vm711, 10, %v775
      %v792 = vsel %vm712, 10, %v776
      %v793 = vsel %vm713, 10, %v777
      %v794 = vsel %vm714, 10, %v778
      %v795 = vsel %vm715, 10, %v779
      %v796 = vsel %vm716, 10, %v780
      %v797 = vsel %vm717, 10, %v781
      %v798 = vsel %vm718, 10, %v782
      %v799 = vsel %vm719, 10, %v783
      %v800 = vsel %vm720, 10, %v784
      %801 = vset.pattern.permute.xlu0 0
      %802 = vperm.xlu0 %801, %v753
      %v803 = vpop.permute.xlu0 %802
      %804 = vset.pattern.permute.xlu0 0
      %805 = vperm.xlu0 %804, %v754
      %v806 = vpop.permute.xlu0 %805
      %807 = vset.pattern.permute.xlu0 0
      %808 = vperm.xlu0 %807, %v755
      %v809 = vpop.permute.xlu0 %808
      %810 = vset.pattern.permute.xlu0 0
      %811 = vperm.xlu0 %810, %v756
      %v812 = vpop.permute.xlu0 %811
      %813 = vset.pattern.permute.xlu0 0
      %814 = vperm.xlu0 %813, %v757
      %v815 = vpop.permute.xlu0 %814
      %816 = vset.pattern.permute.xlu0 0
      %817 = vperm.xlu0 %816, %v758
      %v818 = vpop.permute.xlu0 %817
      %819 = vset.pattern.permute.xlu0 0
      %820 = vperm.xlu0 %819, %v759
      %v821 = vpop.permute.xlu0 %820
      %822 = vset.pattern.permute.xlu0 0
      %823 = vperm.xlu0 %822, %v760
      %v824 = vpop.permute.xlu0 %823
      %825 = vset.pattern.permute.xlu0 0
      %826 = vperm.xlu0 %825, %v761
      %v827 = vpop.permute.xlu0 %826
      %828 = vset.pattern.permute.xlu0 0
      %829 = vperm.xlu0 %828, %v762
      %v830 = vpop.permute.xlu0 %829
      %831 = vset.pattern.permute.xlu0 0
      %832 = vperm.xlu0 %831, %v763
      %v833 = vpop.permute.xlu0 %832
      %834 = vset.pattern.permute.xlu0 0
      %835 = vperm.xlu0 %834, %v764
      %v836 = vpop.permute.xlu0 %835
      %837 = vset.pattern.permute.xlu0 0
      %838 = vperm.xlu0 %837, %v765
      %v839 = vpop.permute.xlu0 %838
      %840 = vset.pattern.permute.xlu0 0
      %841 = vperm.xlu0 %840, %v766
      %v842 = vpop.permute.xlu0 %841
      %843 = vset.pattern.permute.xlu0 0
      %844 = vperm.xlu0 %843, %v767
      %v845 = vpop.permute.xlu0 %844
      %846 = vset.pattern.permute.xlu0 0
      %847 = vperm.xlu0 %846, %v768
      %v848 = vpop.permute.xlu0 %847
      %vm849 = vcmp.ge.s32.totalorder %v704, %v803
      %vm850 = vcmp.ge.s32.totalorder %v704, %v806
      %vm851 = vcmp.ge.s32.totalorder %v704, %v809
      %vm852 = vcmp.ge.s32.totalorder %v704, %v812
      %vm853 = vcmp.ge.s32.totalorder %v704, %v815
      %vm854 = vcmp.ge.s32.totalorder %v704, %v818
      %vm855 = vcmp.ge.s32.totalorder %v704, %v821
      %vm856 = vcmp.ge.s32.totalorder %v704, %v824
      %vm857 = vcmp.ge.s32.totalorder %v704, %v827
      %vm858 = vcmp.ge.s32.totalorder %v704, %v830
      %vm859 = vcmp.ge.s32.totalorder %v704, %v833
      %vm860 = vcmp.ge.s32.totalorder %v704, %v836
      %vm861 = vcmp.ge.s32.totalorder %v704, %v839
      %vm862 = vcmp.ge.s32.totalorder %v704, %v842
      %vm863 = vcmp.ge.s32.totalorder %v704, %v845
      %vm864 = vcmp.ge.s32.totalorder %v704, %v848
      %v865 = vadd.s32 %v753, %v785
      %v866 = vadd.s32 %v754, %v786
      %v867 = vadd.s32 %v755, %v787
      %v868 = vadd.s32 %v756, %v788
      %v869 = vadd.s32 %v757, %v789
      %v870 = vadd.s32 %v758, %v790
      %v871 = vadd.s32 %v759, %v791
      %v872 = vadd.s32 %v760, %v792
      %v873 = vadd.s32 %v761, %v793
      %v874 = vadd.s32 %v762, %v794
      %v875 = vadd.s32 %v763, %v795
      %v876 = vadd.s32 %v764, %v796
      %v877 = vadd.s32 %v765, %v797
      %v878 = vadd.s32 %v766, %v798
      %v879 = vadd.s32 %v767, %v799
      %v880 = vadd.s32 %v768, %v800
      %881 = vset.pattern.permute.xlu0 0
      %882 = vperm.xlu0 %881, %v865
      %v883 = vpop.permute.xlu0 %882
      %884 = vset.pattern.permute.xlu0 0
      %885 = vperm.xlu0 %884, %v866
      %v886 = vpop.permute.xlu0 %885
      %887 = vset.pattern.permute.xlu0 0
      %888 = vperm.xlu0 %887, %v867
      %v889 = vpop.permute.xlu0 %888
      %890 = vset.pattern.permute.xlu0 0
      %891 = vperm.xlu0 %890, %v868
      %v892 = vpop.permute.xlu0 %891
      %893 = vset.pattern.permute.xlu0 0
      %894 = vperm.xlu0 %893, %v869
      %v895 = vpop.permute.xlu0 %894
      %896 = vset.pattern.permute.xlu0 0
      %897 = vperm.xlu0 %896, %v870
      %v898 = vpop.permute.xlu0 %897
      %899 = vset.pattern.permute.xlu0 0
      %900 = vperm.xlu0 %899, %v871
      %v901 = vpop.permute.xlu0 %900
      %902 = vset.pattern.permute.xlu0 0
      %903 = vperm.xlu0 %902, %v872
      %v904 = vpop.permute.xlu0 %903
      %905 = vset.pattern.permute.xlu0 0
      %906 = vperm.xlu0 %905, %v873
      %v907 = vpop.permute.xlu0 %906
      %908 = vset.pattern.permute.xlu0 0
      %909 = vperm.xlu0 %908, %v874
      %v910 = vpop.permute.xlu0 %909
      %911 = vset.pattern.permute.xlu0 0
      %912 = vperm.xlu0 %911, %v875
      %v913 = vpop.permute.xlu0 %912
      %914 = vset.pattern.permute.xlu0 0
      %915 = vperm.xlu0 %914, %v876
      %v916 = vpop.permute.xlu0 %915
      %917 = vset.pattern.permute.xlu0 0
      %918 = vperm.xlu0 %917, %v877
      %v919 = vpop.permute.xlu0 %918
      %920 = vset.pattern.permute.xlu0 0
      %921 = vperm.xlu0 %920, %v878
      %v922 = vpop.permute.xlu0 %921
      %923 = vset.pattern.permute.xlu0 0
      %924 = vperm.xlu0 %923, %v879
      %v925 = vpop.permute.xlu0 %924
      %926 = vset.pattern.permute.xlu0 0
      %927 = vperm.xlu0 %926, %v880
      %v928 = vpop.permute.xlu0 %927
      %vm929 = vcmp.lt.s32.totalorder %v704, %v883
      %vm930 = vcmp.lt.s32.totalorder %v704, %v886
      %vm931 = vcmp.lt.s32.totalorder %v704, %v889
      %vm932 = vcmp.lt.s32.totalorder %v704, %v892
      %vm933 = vcmp.lt.s32.totalorder %v704, %v895
      %vm934 = vcmp.lt.s32.totalorder %v704, %v898
      %vm935 = vcmp.lt.s32.totalorder %v704, %v901
      %vm936 = vcmp.lt.s32.totalorder %v704, %v904
      %vm937 = vcmp.lt.s32.totalorder %v704, %v907
      %vm938 = vcmp.lt.s32.totalorder %v704, %v910
      %vm939 = vcmp.lt.s32.totalorder %v704, %v913
      %vm940 = vcmp.lt.s32.totalorder %v704, %v916
      %vm941 = vcmp.lt.s32.totalorder %v704, %v919
      %vm942 = vcmp.lt.s32.totalorder %v704, %v922
      %vm943 = vcmp.lt.s32.totalorder %v704, %v925
      %vm944 = vcmp.lt.s32.totalorder %v704, %v928
      %vm945 = vmand %vm849, %vm929
      %vm946 = vmand %vm850, %vm930
      %vm947 = vmand %vm851, %vm931
      %vm948 = vmand %vm852, %vm932
      %vm949 = vmand %vm853, %vm933
      %vm950 = vmand %vm854, %vm934
      %vm951 = vmand %vm855, %vm935
      %vm952 = vmand %vm856, %vm936
      %vm953 = vmand %vm857, %vm937
      %vm954 = vmand %vm858, %vm938
      %vm955 = vmand %vm859, %vm939
      %vm956 = vmand %vm860, %vm940
      %vm957 = vmand %vm861, %vm941
      %vm958 = vmand %vm862, %vm942
      %vm959 = vmand %vm863, %vm943
      %vm960 = vmand %vm864, %vm944
      %v961 = vsel %vm945, %v625, -1e+30
      %v962 = vsel %vm946, %v628, -1e+30
      %v963 = vsel %vm947, %v633, -1e+30
      %v964 = vsel %vm948, %v636, -1e+30
      %v965 = vsel %vm949, %v641, -1e+30
      %v966 = vsel %vm950, %v644, -1e+30
      %v967 = vsel %vm951, %v649, -1e+30
      %v968 = vsel %vm952, %v652, -1e+30
      %v969 = vsel %vm953, %v657, -1e+30
      %v970 = vsel %vm954, %v660, -1e+30
      %v971 = vsel %vm955, %v665, -1e+30
      %v972 = vsel %vm956, %v668, -1e+30
      %v973 = vsel %vm957, %v673, -1e+30
      %v974 = vsel %vm958, %v676, -1e+30
      %v975 = vsel %vm959, %v681, -1e+30
      %v976 = vsel %vm960, %v684, -1e+30
      %vm977 = vcmask 146432
      %v978 = vsel %vm977, %v961, -inf
      %979 = vmax.xlane.f32.xlu0 %v978
      %v980 = vpop.xlane.xlu0 %979
      %v981 = vsel %vm977, %v962, -inf
      %982 = vmax.xlane.f32.xlu0 %v981
      %v983 = vpop.xlane.xlu0 %982
      %v984 = vsel %vm977, %v963, -inf
      %985 = vmax.xlane.f32.xlu0 %v984
      %v986 = vpop.xlane.xlu0 %985
      %v987 = vsel %vm977, %v964, -inf
      %988 = vmax.xlane.f32.xlu0 %v987
      %v989 = vpop.xlane.xlu0 %988
      %v990 = vsel %vm977, %v965, -inf
      %991 = vmax.xlane.f32.xlu0 %v990
      %v992 = vpop.xlane.xlu0 %991
      %v993 = vsel %vm977, %v966, -inf
      %994 = vmax.xlane.f32.xlu0 %v993
      %v995 = vpop.xlane.xlu0 %994
      %v996 = vsel %vm977, %v967, -inf
      %997 = vmax.xlane.f32.xlu0 %v996
      %v998 = vpop.xlane.xlu0 %997
      %v999 = vsel %vm977, %v968, -inf
      %1000 = vmax.xlane.f32.xlu0 %v999
      %v1001 = vpop.xlane.xlu0 %1000
      %v1002 = vsel %vm977, %v969, -inf
      %1003 = vmax.xlane.f32.xlu0 %v1002
      %v1004 = vpop.xlane.xlu0 %1003
      %v1005 = vsel %vm977, %v970, -inf
      %1006 = vmax.xlane.f32.xlu0 %v1005
      %v1007 = vpop.xlane.xlu0 %1006
      %v1008 = vsel %vm977, %v971, -inf
      %1009 = vmax.xlane.f32.xlu0 %v1008
      %v1010 = vpop.xlane.xlu0 %1009
      %v1011 = vsel %vm977, %v972, -inf
      %1012 = vmax.xlane.f32.xlu0 %v1011
      %v1013 = vpop.xlane.xlu0 %1012
      %v1014 = vsel %vm977, %v973, -inf
      %1015 = vmax.xlane.f32.xlu0 %v1014
      %v1016 = vpop.xlane.xlu0 %1015
      %v1017 = vsel %vm977, %v974, -inf
      %1018 = vmax.xlane.f32.xlu0 %v1017
      %v1019 = vpop.xlane.xlu0 %1018
      %v1020 = vsel %vm977, %v975, -inf
      %1021 = vmax.xlane.f32.xlu0 %v1020
      %v1022 = vpop.xlane.xlu0 %1021
      %v1023 = vsel %vm977, %v976, -inf
      %1024 = vmax.xlane.f32.xlu0 %v1023
      %v1025 = vpop.xlane.xlu0 %1024
      %vm1026 = vcmp.eq.f32.partialorder %v961, %v980
      %vm1027 = vcmp.eq.f32.partialorder %v962, %v983
      %vm1028 = vcmp.eq.f32.partialorder %v963, %v986
      %vm1029 = vcmp.eq.f32.partialorder %v964, %v989
      %vm1030 = vcmp.eq.f32.partialorder %v965, %v992
      %vm1031 = vcmp.eq.f32.partialorder %v966, %v995
      %vm1032 = vcmp.eq.f32.partialorder %v967, %v998
      %vm1033 = vcmp.eq.f32.partialorder %v968, %v1001
      %vm1034 = vcmp.eq.f32.partialorder %v969, %v1004
      %vm1035 = vcmp.eq.f32.partialorder %v970, %v1007
      %vm1036 = vcmp.eq.f32.partialorder %v971, %v1010
      %vm1037 = vcmp.eq.f32.partialorder %v972, %v1013
      %vm1038 = vcmp.eq.f32.partialorder %v973, %v1016
      %vm1039 = vcmp.eq.f32.partialorder %v974, %v1019
      %vm1040 = vcmp.eq.f32.partialorder %v975, %v1022
      %vm1041 = vcmp.eq.f32.partialorder %v976, %v1025
      %v1042 = vsel %vm1026, %v704, 18
      %v1043 = vsel %vm1027, %v704, 18
      %v1044 = vsel %vm1028, %v704, 18
      %v1045 = vsel %vm1029, %v704, 18
      %v1046 = vsel %vm1030, %v704, 18
      %v1047 = vsel %vm1031, %v704, 18
      %v1048 = vsel %vm1032, %v704, 18
      %v1049 = vsel %vm1033, %v704, 18
      %v1050 = vsel %vm1034, %v704, 18
      %v1051 = vsel %vm1035, %v704, 18
      %v1052 = vsel %vm1036, %v704, 18
      %v1053 = vsel %vm1037, %v704, 18
      %v1054 = vsel %vm1038, %v704, 18
      %v1055 = vsel %vm1039, %v704, 18
      %v1056 = vsel %vm1040, %v704, 18
      %v1057 = vsel %vm1041, %v704, 18
      %v1058 = vsel %vm977, %v1042, 2147483647
      %v1059 = vand.u32 %v1058, 65535
      %v1060 = vshra.s32 %v1058, 16
      %v1061 = vcvt.s32.f32 %v1059
      %v1062 = vcvt.s32.f32 %v1060
      %1063 = vmin.xlane.f32.xlu0 %v1062
      %v1064 = vpop.xlane.xlu0 %1063
      %vm1065 = vcmp.eq.f32.partialorder %v1062, %v1064
      %v1066 = vsel %vm1065, %v1061, inf
      %1067 = vmin.xlane.f32.xlu0 %v1066
      %v1068 = vpop.xlane.xlu0 %1067
      %v1069 = vcvt.f32.s32 %v1068
      %v1070 = vcvt.f32.s32 %v1064
      %v1071 = vshll.u32 %v1070, 16
      %v1072 = vadd.s32 %v1071, %v1069
      %v1073 = vsel %vm977, %v1043, 2147483647
      %v1074 = vand.u32 %v1073, 65535
      %v1075 = vshra.s32 %v1073, 16
      %v1076 = vcvt.s32.f32 %v1074
      %v1077 = vcvt.s32.f32 %v1075
      %1078 = vmin.xlane.f32.xlu0 %v1077
      %v1079 = vpop.xlane.xlu0 %1078
      %vm1080 = vcmp.eq.f32.partialorder %v1077, %v1079
      %v1081 = vsel %vm1080, %v1076, inf
      %1082 = vmin.xlane.f32.xlu0 %v1081
      %v1083 = vpop.xlane.xlu0 %1082
      %v1084 = vcvt.f32.s32 %v1083
      %v1085 = vcvt.f32.s32 %v1079
      %v1086 = vshll.u32 %v1085, 16
      %v1087 = vadd.s32 %v1086, %v1084
      %v1088 = vsel %vm977, %v1044, 2147483647
      %v1089 = vand.u32 %v1088, 65535
      %v1090 = vshra.s32 %v1088, 16
      %v1091 = vcvt.s32.f32 %v1089
      %v1092 = vcvt.s32.f32 %v1090
      %1093 = vmin.xlane.f32.xlu0 %v1092
      %v1094 = vpop.xlane.xlu0 %1093
      %vm1095 = vcmp.eq.f32.partialorder %v1092, %v1094
      %v1096 = vsel %vm1095, %v1091, inf
      %1097 = vmin.xlane.f32.xlu0 %v1096
      %v1098 = vpop.xlane.xlu0 %1097
      %v1099 = vcvt.f32.s32 %v1098
      %v1100 = vcvt.f32.s32 %v1094
      %v1101 = vshll.u32 %v1100, 16
      %v1102 = vadd.s32 %v1101, %v1099
      %v1103 = vsel %vm977, %v1045, 2147483647
      %v1104 = vand.u32 %v1103, 65535
      %v1105 = vshra.s32 %v1103, 16
      %v1106 = vcvt.s32.f32 %v1104
      %v1107 = vcvt.s32.f32 %v1105
      %1108 = vmin.xlane.f32.xlu0 %v1107
      %v1109 = vpop.xlane.xlu0 %1108
      %vm1110 = vcmp.eq.f32.partialorder %v1107, %v1109
      %v1111 = vsel %vm1110, %v1106, inf
      %1112 = vmin.xlane.f32.xlu0 %v1111
      %v1113 = vpop.xlane.xlu0 %1112
      %v1114 = vcvt.f32.s32 %v1113
      %v1115 = vcvt.f32.s32 %v1109
      %v1116 = vshll.u32 %v1115, 16
      %v1117 = vadd.s32 %v1116, %v1114
      %v1118 = vsel %vm977, %v1046, 2147483647
      %v1119 = vand.u32 %v1118, 65535
      %v1120 = vshra.s32 %v1118, 16
      %v1121 = vcvt.s32.f32 %v1119
      %v1122 = vcvt.s32.f32 %v1120
      %1123 = vmin.xlane.f32.xlu0 %v1122
      %v1124 = vpop.xlane.xlu0 %1123
      %vm1125 = vcmp.eq.f32.partialorder %v1122, %v1124
      %v1126 = vsel %vm1125, %v1121, inf
      %1127 = vmin.xlane.f32.xlu0 %v1126
      %v1128 = vpop.xlane.xlu0 %1127
      %v1129 = vcvt.f32.s32 %v1128
      %v1130 = vcvt.f32.s32 %v1124
      %v1131 = vshll.u32 %v1130, 16
      %v1132 = vadd.s32 %v1131, %v1129
      %v1133 = vsel %vm977, %v1047, 2147483647
      %v1134 = vand.u32 %v1133, 65535
      %v1135 = vshra.s32 %v1133, 16
      %v1136 = vcvt.s32.f32 %v1134
      %v1137 = vcvt.s32.f32 %v1135
      %1138 = vmin.xlane.f32.xlu0 %v1137
      %v1139 = vpop.xlane.xlu0 %1138
      %vm1140 = vcmp.eq.f32.partialorder %v1137, %v1139
      %v1141 = vsel %vm1140, %v1136, inf
      %1142 = vmin.xlane.f32.xlu0 %v1141
      %v1143 = vpop.xlane.xlu0 %1142
      %v1144 = vcvt.f32.s32 %v1143
      %v1145 = vcvt.f32.s32 %v1139
      %v1146 = vshll.u32 %v1145, 16
      %v1147 = vadd.s32 %v1146, %v1144
      %v1148 = vsel %vm977, %v1048, 2147483647
      %v1149 = vand.u32 %v1148, 65535
      %v1150 = vshra.s32 %v1148, 16
      %v1151 = vcvt.s32.f32 %v1149
      %v1152 = vcvt.s32.f32 %v1150
      %1153 = vmin.xlane.f32.xlu0 %v1152
      %v1154 = vpop.xlane.xlu0 %1153
      %vm1155 = vcmp.eq.f32.partialorder %v1152, %v1154
      %v1156 = vsel %vm1155, %v1151, inf
      %1157 = vmin.xlane.f32.xlu0 %v1156
      %v1158 = vpop.xlane.xlu0 %1157
      %v1159 = vcvt.f32.s32 %v1158
      %v1160 = vcvt.f32.s32 %v1154
      %v1161 = vshll.u32 %v1160, 16
      %v1162 = vadd.s32 %v1161, %v1159
      %v1163 = vsel %vm977, %v1049, 2147483647
      %v1164 = vand.u32 %v1163, 65535
      %v1165 = vshra.s32 %v1163, 16
      %v1166 = vcvt.s32.f32 %v1164
      %v1167 = vcvt.s32.f32 %v1165
      %1168 = vmin.xlane.f32.xlu0 %v1167
      %v1169 = vpop.xlane.xlu0 %1168
      %vm1170 = vcmp.eq.f32.partialorder %v1167, %v1169
      %v1171 = vsel %vm1170, %v1166, inf
      %1172 = vmin.xlane.f32.xlu0 %v1171
      %v1173 = vpop.xlane.xlu0 %1172
      %v1174 = vcvt.f32.s32 %v1173
      %v1175 = vcvt.f32.s32 %v1169
      %v1176 = vshll.u32 %v1175, 16
      %v1177 = vadd.s32 %v1176, %v1174
      %v1178 = vsel %vm977, %v1050, 2147483647
      %v1179 = vand.u32 %v1178, 65535
      %v1180 = vshra.s32 %v1178, 16
      %v1181 = vcvt.s32.f32 %v1179
      %v1182 = vcvt.s32.f32 %v1180
      %1183 = vmin.xlane.f32.xlu0 %v1182
      %v1184 = vpop.xlane.xlu0 %1183
      %vm1185 = vcmp.eq.f32.partialorder %v1182, %v1184
      %v1186 = vsel %vm1185, %v1181, inf
      %1187 = vmin.xlane.f32.xlu0 %v1186
      %v1188 = vpop.xlane.xlu0 %1187
      %v1189 = vcvt.f32.s32 %v1188
      %v1190 = vcvt.f32.s32 %v1184
      %v1191 = vshll.u32 %v1190, 16
      %v1192 = vadd.s32 %v1191, %v1189
      %v1193 = vsel %vm977, %v1051, 2147483647
      %v1194 = vand.u32 %v1193, 65535
      %v1195 = vshra.s32 %v1193, 16
      %v1196 = vcvt.s32.f32 %v1194
      %v1197 = vcvt.s32.f32 %v1195
      %1198 = vmin.xlane.f32.xlu0 %v1197
      %v1199 = vpop.xlane.xlu0 %1198
      %vm1200 = vcmp.eq.f32.partialorder %v1197, %v1199
      %v1201 = vsel %vm1200, %v1196, inf
      %1202 = vmin.xlane.f32.xlu0 %v1201
      %v1203 = vpop.xlane.xlu0 %1202
      %v1204 = vcvt.f32.s32 %v1203
      %v1205 = vcvt.f32.s32 %v1199
      %v1206 = vshll.u32 %v1205, 16
      %v1207 = vadd.s32 %v1206, %v1204
      %v1208 = vsel %vm977, %v1052, 2147483647
      %v1209 = vand.u32 %v1208, 65535
      %v1210 = vshra.s32 %v1208, 16
      %v1211 = vcvt.s32.f32 %v1209
      %v1212 = vcvt.s32.f32 %v1210
      %1213 = vmin.xlane.f32.xlu0 %v1212
      %v1214 = vpop.xlane.xlu0 %1213
      %vm1215 = vcmp.eq.f32.partialorder %v1212, %v1214
      %v1216 = vsel %vm1215, %v1211, inf
      %1217 = vmin.xlane.f32.xlu0 %v1216
      %v1218 = vpop.xlane.xlu0 %1217
      %v1219 = vcvt.f32.s32 %v1218
      %v1220 = vcvt.f32.s32 %v1214
      %v1221 = vshll.u32 %v1220, 16
      %v1222 = vadd.s32 %v1221, %v1219
      %v1223 = vsel %vm977, %v1053, 2147483647
      %v1224 = vand.u32 %v1223, 65535
      %v1225 = vshra.s32 %v1223, 16
      %v1226 = vcvt.s32.f32 %v1224
      %v1227 = vcvt.s32.f32 %v1225
      %1228 = vmin.xlane.f32.xlu0 %v1227
      %v1229 = vpop.xlane.xlu0 %1228
      %vm1230 = vcmp.eq.f32.partialorder %v1227, %v1229
      %v1231 = vsel %vm1230, %v1226, inf
      %1232 = vmin.xlane.f32.xlu0 %v1231
      %v1233 = vpop.xlane.xlu0 %1232
      %v1234 = vcvt.f32.s32 %v1233
      %v1235 = vcvt.f32.s32 %v1229
      %v1236 = vshll.u32 %v1235, 16
      %v1237 = vadd.s32 %v1236, %v1234
      %v1238 = vsel %vm977, %v1054, 2147483647
      %v1239 = vand.u32 %v1238, 65535
      %v1240 = vshra.s32 %v1238, 16
      %v1241 = vcvt.s32.f32 %v1239
      %v1242 = vcvt.s32.f32 %v1240
      %1243 = vmin.xlane.f32.xlu0 %v1242
      %v1244 = vpop.xlane.xlu0 %1243
      %vm1245 = vcmp.eq.f32.partialorder %v1242, %v1244
      %v1246 = vsel %vm1245, %v1241, inf
      %1247 = vmin.xlane.f32.xlu0 %v1246
      %v1248 = vpop.xlane.xlu0 %1247
      %v1249 = vcvt.f32.s32 %v1248
      %v1250 = vcvt.f32.s32 %v1244
      %v1251 = vshll.u32 %v1250, 16
      %v1252 = vadd.s32 %v1251, %v1249
      %v1253 = vsel %vm977, %v1055, 2147483647
      %v1254 = vand.u32 %v1253, 65535
      %v1255 = vshra.s32 %v1253, 16
      %v1256 = vcvt.s32.f32 %v1254
      %v1257 = vcvt.s32.f32 %v1255
      %1258 = vmin.xlane.f32.xlu0 %v1257
      %v1259 = vpop.xlane.xlu0 %1258
      %vm1260 = vcmp.eq.f32.partialorder %v1257, %v1259
      %v1261 = vsel %vm1260, %v1256, inf
      %1262 = vmin.xlane.f32.xlu0 %v1261
      %v1263 = vpop.xlane.xlu0 %1262
      %v1264 = vcvt.f32.s32 %v1263
      %v1265 = vcvt.f32.s32 %v1259
      %v1266 = vshll.u32 %v1265, 16
      %v1267 = vadd.s32 %v1266, %v1264
      %v1268 = vsel %vm977, %v1056, 2147483647
      %v1269 = vand.u32 %v1268, 65535
      %v1270 = vshra.s32 %v1268, 16
      %v1271 = vcvt.s32.f32 %v1269
      %v1272 = vcvt.s32.f32 %v1270
      %1273 = vmin.xlane.f32.xlu0 %v1272
      %v1274 = vpop.xlane.xlu0 %1273
      %vm1275 = vcmp.eq.f32.partialorder %v1272, %v1274
      %v1276 = vsel %vm1275, %v1271, inf
      %1277 = vmin.xlane.f32.xlu0 %v1276
      %v1278 = vpop.xlane.xlu0 %1277
      %v1279 = vcvt.f32.s32 %v1278
      %v1280 = vcvt.f32.s32 %v1274
      %v1281 = vshll.u32 %v1280, 16
      %v1282 = vadd.s32 %v1281, %v1279
      %v1283 = vsel %vm977, %v1057, 2147483647
      %v1284 = vand.u32 %v1283, 65535
      %v1285 = vshra.s32 %v1283, 16
      %v1286 = vcvt.s32.f32 %v1284
      %v1287 = vcvt.s32.f32 %v1285
      %1288 = vmin.xlane.f32.xlu0 %v1287
      %v1289 = vpop.xlane.xlu0 %1288
      %vm1290 = vcmp.eq.f32.partialorder %v1287, %v1289
      %v1291 = vsel %vm1290, %v1286, inf
      %1292 = vmin.xlane.f32.xlu0 %v1291
      %v1293 = vpop.xlane.xlu0 %1292
      %v1294 = vcvt.f32.s32 %v1293
      %v1295 = vcvt.f32.s32 %v1289
      %v1296 = vshll.u32 %v1295, 16
      %v1297 = vadd.s32 %v1296, %v1294
      %v1298 = vsub.s32 %v1072, %v753
      %v1299 = vsub.s32 %v1087, %v754
      %v1300 = vsub.s32 %v1102, %v755
      %v1301 = vsub.s32 %v1117, %v756
      %v1302 = vsub.s32 %v1132, %v757
      %v1303 = vsub.s32 %v1147, %v758
      %v1304 = vsub.s32 %v1162, %v759
      %v1305 = vsub.s32 %v1177, %v760
      %v1306 = vsub.s32 %v1192, %v761
      %v1307 = vsub.s32 %v1207, %v762
      %v1308 = vsub.s32 %v1222, %v763
      %v1309 = vsub.s32 %v1237, %v764
      %v1310 = vsub.s32 %v1252, %v765
      %v1311 = vsub.s32 %v1267, %v766
      %v1312 = vsub.s32 %v1282, %v767
      %v1313 = vsub.s32 %v1297, %v768
      %vm1314 = vcmask 7168
      %1315 = vst.msk [vmem:[%s310] sm:$0xff] %vm1314, %v1298
      %1316 = vst.msk [vmem:[%s310 + $0x8] sm:$0xff] %vm1314, %v1299
      %1317 = vst.msk [vmem:[%s310 + $0x10] sm:$0xff] %vm1314, %v1300
      %1318 = vst.msk [vmem:[%s310 + $0x18] sm:$0xff] %vm1314, %v1301
      %1319 = vst.msk [vmem:[%s310 + $0x20] sm:$0xff] %vm1314, %v1302
      %1320 = vst.msk [vmem:[%s310 + $0x28] sm:$0xff] %vm1314, %v1303
      %1321 = vst.msk [vmem:[%s310 + $0x30] sm:$0xff] %vm1314, %v1304
      %1322 = vst.msk [vmem:[%s310 + $0x38] sm:$0xff] %vm1314, %v1305
      %1323 = vst.msk [vmem:[%s310 + $0x40] sm:$0xff] %vm1314, %v1306
      %1324 = vst.msk [vmem:[%s310 + $0x48] sm:$0xff] %vm1314, %v1307
      %1325 = vst.msk [vmem:[%s310 + $0x50] sm:$0xff] %vm1314, %v1308
      %1326 = vst.msk [vmem:[%s310 + $0x58] sm:$0xff] %vm1314, %v1309
      %1327 = vst.msk [vmem:[%s310 + $0x60] sm:$0xff] %vm1314, %v1310
      %1328 = vst.msk [vmem:[%s310 + $0x68] sm:$0xff] %vm1314, %v1311
      %1329 = vst.msk [vmem:[%s310 + $0x70] sm:$0xff] %vm1314, %v1312
      %1330 = vst.msk [vmem:[%s310 + $0x78] sm:$0xff] %vm1314, %v1313
      %v1331 = vsub.f32 %v961, %v980
      %v1332 = vsub.f32 %v962, %v983
      %v1333 = vsub.f32 %v963, %v986
      %v1334 = vsub.f32 %v964, %v989
      %v1335 = vsub.f32 %v965, %v992
      %v1336 = vsub.f32 %v966, %v995
      %v1337 = vsub.f32 %v967, %v998
      %v1338 = vsub.f32 %v968, %v1001
      %v1339 = vsub.f32 %v969, %v1004
      %v1340 = vsub.f32 %v970, %v1007
      %v1341 = vsub.f32 %v971, %v1010
      %v1342 = vsub.f32 %v972, %v1013
      %v1343 = vsub.f32 %v973, %v1016
      %v1344 = vsub.f32 %v974, %v1019
      %v1345 = vsub.f32 %v975, %v1022
      %v1346 = vsub.f32 %v976, %v1025
      %v1347 = vmul.f32 %v1331, 1.442695
      %v1348 = vpow.pop %v1347
      %v1349 = vmul.f32 %v1332, 1.442695
      %v1350 = vpow.pop %v1349
      %v1351 = vmul.f32 %v1333, 1.442695
      %v1352 = vpow.pop %v1351
      %v1353 = vmul.f32 %v1334, 1.442695
      %v1354 = vpow.pop %v1353
      %v1355 = vmul.f32 %v1335, 1.442695
      %v1356 = vpow.pop %v1355
      %v1357 = vmul.f32 %v1336, 1.442695
      %v1358 = vpow.pop %v1357
      %v1359 = vmul.f32 %v1337, 1.442695
      %v1360 = vpow.pop %v1359
      %v1361 = vmul.f32 %v1338, 1.442695
      %v1362 = vpow.pop %v1361
      %v1363 = vmul.f32 %v1339, 1.442695
      %v1364 = vpow.pop %v1363
      %v1365 = vmul.f32 %v1340, 1.442695
      %v1366 = vpow.pop %v1365
      %v1367 = vmul.f32 %v1341, 1.442695
      %v1368 = vpow.pop %v1367
      %v1369 = vmul.f32 %v1342, 1.442695
      %v1370 = vpow.pop %v1369
      %v1371 = vmul.f32 %v1343, 1.442695
      %v1372 = vpow.pop %v1371
      %v1373 = vmul.f32 %v1344, 1.442695
      %v1374 = vpow.pop %v1373
      %v1375 = vmul.f32 %v1345, 1.442695
      %v1376 = vpow.pop %v1375
      %v1377 = vmul.f32 %v1346, 1.442695
      %v1378 = vpow.pop %v1377
      %v1379 = vsel %vm977, %v1348, 0.0
      %1380 = vadd.xlane.f32.xlu0 %v1379
      %v1381 = vpop.xlane.xlu0 %1380
      %v1382 = vsel %vm977, %v1350, 0.0
      %1383 = vadd.xlane.f32.xlu0 %v1382
      %v1384 = vpop.xlane.xlu0 %1383
      %v1385 = vsel %vm977, %v1352, 0.0
      %1386 = vadd.xlane.f32.xlu0 %v1385
      %v1387 = vpop.xlane.xlu0 %1386
      %v1388 = vsel %vm977, %v1354, 0.0
      %1389 = vadd.xlane.f32.xlu0 %v1388
      %v1390 = vpop.xlane.xlu0 %1389
      %v1391 = vsel %vm977, %v1356, 0.0
      %1392 = vadd.xlane.f32.xlu0 %v1391
      %v1393 = vpop.xlane.xlu0 %1392
      %v1394 = vsel %vm977, %v1358, 0.0
      %1395 = vadd.xlane.f32.xlu0 %v1394
      %v1396 = vpop.xlane.xlu0 %1395
      %v1397 = vsel %vm977, %v1360, 0.0
      %1398 = vadd.xlane.f32.xlu0 %v1397
      %v1399 = vpop.xlane.xlu0 %1398
      %v1400 = vsel %vm977, %v1362, 0.0
      %1401 = vadd.xlane.f32.xlu0 %v1400
      %v1402 = vpop.xlane.xlu0 %1401
      %v1403 = vsel %vm977, %v1364, 0.0
      %1404 = vadd.xlane.f32.xlu0 %v1403
      %v1405 = vpop.xlane.xlu0 %1404
      %v1406 = vsel %vm977, %v1366, 0.0
      %1407 = vadd.xlane.f32.xlu0 %v1406
      %v1408 = vpop.xlane.xlu0 %1407
      %v1409 = vsel %vm977, %v1368, 0.0
      %1410 = vadd.xlane.f32.xlu0 %v1409
      %v1411 = vpop.xlane.xlu0 %1410
      %v1412 = vsel %vm977, %v1370, 0.0
      %1413 = vadd.xlane.f32.xlu0 %v1412
      %v1414 = vpop.xlane.xlu0 %1413
      %v1415 = vsel %vm977, %v1372, 0.0
      %1416 = vadd.xlane.f32.xlu0 %v1415
      %v1417 = vpop.xlane.xlu0 %1416
      %v1418 = vsel %vm977, %v1374, 0.0
      %1419 = vadd.xlane.f32.xlu0 %v1418
      %v1420 = vpop.xlane.xlu0 %1419
      %v1421 = vsel %vm977, %v1376, 0.0
      %1422 = vadd.xlane.f32.xlu0 %v1421
      %v1423 = vpop.xlane.xlu0 %1422
      %v1424 = vsel %vm977, %v1378, 0.0
      %1425 = vadd.xlane.f32.xlu0 %v1424
      %v1426 = vpop.xlane.xlu0 %1425
      %v1427 = vlog2.pop %v1381
      %v1428 = vmul.f32 %v1427, 0.6931472
      %v1429 = vlog2.pop %v1384
      %v1430 = vmul.f32 %v1429, 0.6931472
      %v1431 = vlog2.pop %v1387
      %v1432 = vmul.f32 %v1431, 0.6931472
      %v1433 = vlog2.pop %v1390
      %v1434 = vmul.f32 %v1433, 0.6931472
      %v1435 = vlog2.pop %v1393
      %v1436 = vmul.f32 %v1435, 0.6931472
      %v1437 = vlog2.pop %v1396
      %v1438 = vmul.f32 %v1437, 0.6931472
      %v1439 = vlog2.pop %v1399
      %v1440 = vmul.f32 %v1439, 0.6931472
      %v1441 = vlog2.pop %v1402
      %v1442 = vmul.f32 %v1441, 0.6931472
      %v1443 = vlog2.pop %v1405
      %v1444 = vmul.f32 %v1443, 0.6931472
      %v1445 = vlog2.pop %v1408
      %v1446 = vmul.f32 %v1445, 0.6931472
      %v1447 = vlog2.pop %v1411
      %v1448 = vmul.f32 %v1447, 0.6931472
      %v1449 = vlog2.pop %v1414
      %v1450 = vmul.f32 %v1449, 0.6931472
      %v1451 = vlog2.pop %v1417
      %v1452 = vmul.f32 %v1451, 0.6931472
      %v1453 = vlog2.pop %v1420
      %v1454 = vmul.f32 %v1453, 0.6931472
      %v1455 = vlog2.pop %v1423
      %v1456 = vmul.f32 %v1455, 0.6931472
      %v1457 = vlog2.pop %v1426
      %v1458 = vmul.f32 %v1457, 0.6931472
      %v1459 = vadd.f32 %v980, %v1428
      %v1460 = vadd.f32 %v983, %v1430
      %v1461 = vadd.f32 %v986, %v1432
      %v1462 = vadd.f32 %v989, %v1434
      %v1463 = vadd.f32 %v992, %v1436
      %v1464 = vadd.f32 %v995, %v1438
      %v1465 = vadd.f32 %v998, %v1440
      %v1466 = vadd.f32 %v1001, %v1442
      %v1467 = vadd.f32 %v1004, %v1444
      %v1468 = vadd.f32 %v1007, %v1446
      %v1469 = vadd.f32 %v1010, %v1448
      %v1470 = vadd.f32 %v1013, %v1450
      %v1471 = vadd.f32 %v1016, %v1452
      %v1472 = vadd.f32 %v1019, %v1454
      %v1473 = vadd.f32 %v1022, %v1456
      %v1474 = vadd.f32 %v1025, %v1458
      %1475 = vrot.lane.b32.xlu0 %v687, 127
      %v1476 = vpop.permute.xlu0 %1475
      %1477 = vrot.lane.b32.xlu0 %v688, 127
      %v1478 = vpop.permute.xlu0 %1477
      %1479 = vrot.lane.b32.xlu0 %v689, 127
      %v1480 = vpop.permute.xlu0 %1479
      %1481 = vrot.lane.b32.xlu0 %v690, 127
      %v1482 = vpop.permute.xlu0 %1481
      %1483 = vrot.lane.b32.xlu0 %v691, 127
      %v1484 = vpop.permute.xlu0 %1483
      %1485 = vrot.lane.b32.xlu0 %v692, 127
      %v1486 = vpop.permute.xlu0 %1485
      %1487 = vrot.lane.b32.xlu0 %v693, 127
      %v1488 = vpop.permute.xlu0 %1487
      %1489 = vrot.lane.b32.xlu0 %v694, 127
      %v1490 = vpop.permute.xlu0 %1489
      %1491 = vrot.lane.b32.xlu0 %v695, 127
      %v1492 = vpop.permute.xlu0 %1491
      %1493 = vrot.lane.b32.xlu0 %v696, 127
      %v1494 = vpop.permute.xlu0 %1493
      %1495 = vrot.lane.b32.xlu0 %v697, 127
      %v1496 = vpop.permute.xlu0 %1495
      %1497 = vrot.lane.b32.xlu0 %v698, 127
      %v1498 = vpop.permute.xlu0 %1497
      %1499 = vrot.lane.b32.xlu0 %v699, 127
      %v1500 = vpop.permute.xlu0 %1499
      %1501 = vrot.lane.b32.xlu0 %v700, 127
      %v1502 = vpop.permute.xlu0 %1501
      %1503 = vrot.lane.b32.xlu0 %v701, 127
      %v1504 = vpop.permute.xlu0 %1503
      %1505 = vrot.lane.b32.xlu0 %v702, 127
      %v1506 = vpop.permute.xlu0 %1505
      %v1507 = vadd.s32 %v753, %v1476
      %v1508 = vadd.s32 %v754, %v1478
      %v1509 = vadd.s32 %v755, %v1480
      %v1510 = vadd.s32 %v756, %v1482
      %v1511 = vadd.s32 %v757, %v1484
      %v1512 = vadd.s32 %v758, %v1486
      %v1513 = vadd.s32 %v759, %v1488
      %v1514 = vadd.s32 %v760, %v1490
      %v1515 = vadd.s32 %v761, %v1492
      %v1516 = vadd.s32 %v762, %v1494
      %v1517 = vadd.s32 %v763, %v1496
      %v1518 = vadd.s32 %v764, %v1498
      %v1519 = vadd.s32 %v765, %v1500
      %v1520 = vadd.s32 %v766, %v1502
      %v1521 = vadd.s32 %v767, %v1504
      %v1522 = vadd.s32 %v768, %v1506
      %1523 = vset.pattern.permute.xlu0 0
      %1524 = vperm.xlu0 %1523, %v1507
      %v1525 = vpop.permute.xlu0 %1524
      %1526 = vset.pattern.permute.xlu0 0
      %1527 = vperm.xlu0 %1526, %v1508
      %v1528 = vpop.permute.xlu0 %1527
      %1529 = vset.pattern.permute.xlu0 0
      %1530 = vperm.xlu0 %1529, %v1509
      %v1531 = vpop.permute.xlu0 %1530
      %1532 = vset.pattern.permute.xlu0 0
      %1533 = vperm.xlu0 %1532, %v1510
      %v1534 = vpop.permute.xlu0 %1533
      %1535 = vset.pattern.permute.xlu0 0
      %1536 = vperm.xlu0 %1535, %v1511
      %v1537 = vpop.permute.xlu0 %1536
      %1538 = vset.pattern.permute.xlu0 0
      %1539 = vperm.xlu0 %1538, %v1512
      %v1540 = vpop.permute.xlu0 %1539
      %1541 = vset.pattern.permute.xlu0 0
      %1542 = vperm.xlu0 %1541, %v1513
      %v1543 = vpop.permute.xlu0 %1542
      %1544 = vset.pattern.permute.xlu0 0
      %1545 = vperm.xlu0 %1544, %v1514
      %v1546 = vpop.permute.xlu0 %1545
      %1547 = vset.pattern.permute.xlu0 0
      %1548 = vperm.xlu0 %1547, %v1515
      %v1549 = vpop.permute.xlu0 %1548
      %1550 = vset.pattern.permute.xlu0 0
      %1551 = vperm.xlu0 %1550, %v1516
      %v1552 = vpop.permute.xlu0 %1551
      %1553 = vset.pattern.permute.xlu0 0
      %1554 = vperm.xlu0 %1553, %v1517
      %v1555 = vpop.permute.xlu0 %1554
      %1556 = vset.pattern.permute.xlu0 0
      %1557 = vperm.xlu0 %1556, %v1518
      %v1558 = vpop.permute.xlu0 %1557
      %1559 = vset.pattern.permute.xlu0 0
      %1560 = vperm.xlu0 %1559, %v1519
      %v1561 = vpop.permute.xlu0 %1560
      %1562 = vset.pattern.permute.xlu0 0
      %1563 = vperm.xlu0 %1562, %v1520
      %v1564 = vpop.permute.xlu0 %1563
      %1565 = vset.pattern.permute.xlu0 0
      %1566 = vperm.xlu0 %1565, %v1521
      %v1567 = vpop.permute.xlu0 %1566
      %1568 = vset.pattern.permute.xlu0 0
      %1569 = vperm.xlu0 %1568, %v1522
      %v1570 = vpop.permute.xlu0 %1569
      %vm1571 = vcmp.eq.s32.totalorder %v704, %v1525
      %vm1572 = vcmp.eq.s32.totalorder %v704, %v1528
      %vm1573 = vcmp.eq.s32.totalorder %v704, %v1531
      %vm1574 = vcmp.eq.s32.totalorder %v704, %v1534
      %vm1575 = vcmp.eq.s32.totalorder %v704, %v1537
      %vm1576 = vcmp.eq.s32.totalorder %v704, %v1540
      %vm1577 = vcmp.eq.s32.totalorder %v704, %v1543
      %vm1578 = vcmp.eq.s32.totalorder %v704, %v1546
      %vm1579 = vcmp.eq.s32.totalorder %v704, %v1549
      %vm1580 = vcmp.eq.s32.totalorder %v704, %v1552
      %vm1581 = vcmp.eq.s32.totalorder %v704, %v1555
      %vm1582 = vcmp.eq.s32.totalorder %v704, %v1558
      %vm1583 = vcmp.eq.s32.totalorder %v704, %v1561
      %vm1584 = vcmp.eq.s32.totalorder %v704, %v1564
      %vm1585 = vcmp.eq.s32.totalorder %v704, %v1567
      %vm1586 = vcmp.eq.s32.totalorder %v704, %v1570
      %v1587 = vsel %vm1571, %v625, 0.0
      %v1588 = vsel %vm1572, %v628, 0.0
      %v1589 = vsel %vm1573, %v633, 0.0
      %v1590 = vsel %vm1574, %v636, 0.0
      %v1591 = vsel %vm1575, %v641, 0.0
      %v1592 = vsel %vm1576, %v644, 0.0
      %v1593 = vsel %vm1577, %v649, 0.0
      %v1594 = vsel %vm1578, %v652, 0.0
      %v1595 = vsel %vm1579, %v657, 0.0
      %v1596 = vsel %vm1580, %v660, 0.0
      %v1597 = vsel %vm1581, %v665, 0.0
      %v1598 = vsel %vm1582, %v668, 0.0
      %v1599 = vsel %vm1583, %v673, 0.0
      %v1600 = vsel %vm1584, %v676, 0.0
      %v1601 = vsel %vm1585, %v681, 0.0
      %v1602 = vsel %vm1586, %v684, 0.0
      %v1603 = vsel %vm977, %v1587, 0.0
      %1604 = vadd.xlane.f32.xlu0 %v1603
      %v1605 = vpop.xlane.xlu0 %1604
      %v1606 = vsel %vm977, %v1588, 0.0
      %1607 = vadd.xlane.f32.xlu0 %v1606
      %v1608 = vpop.xlane.xlu0 %1607
      %v1609 = vsel %vm977, %v1589, 0.0
      %1610 = vadd.xlane.f32.xlu0 %v1609
      %v1611 = vpop.xlane.xlu0 %1610
      %v1612 = vsel %vm977, %v1590, 0.0
      %1613 = vadd.xlane.f32.xlu0 %v1612
      %v1614 = vpop.xlane.xlu0 %1613
      %v1615 = vsel %vm977, %v1591, 0.0
      %1616 = vadd.xlane.f32.xlu0 %v1615
      %v1617 = vpop.xlane.xlu0 %1616
      %v1618 = vsel %vm977, %v1592, 0.0
      %1619 = vadd.xlane.f32.xlu0 %v1618
      %v1620 = vpop.xlane.xlu0 %1619
      %v1621 = vsel %vm977, %v1593, 0.0
      %1622 = vadd.xlane.f32.xlu0 %v1621
      %v1623 = vpop.xlane.xlu0 %1622
      %v1624 = vsel %vm977, %v1594, 0.0
      %1625 = vadd.xlane.f32.xlu0 %v1624
      %v1626 = vpop.xlane.xlu0 %1625
      %v1627 = vsel %vm977, %v1595, 0.0
      %1628 = vadd.xlane.f32.xlu0 %v1627
      %v1629 = vpop.xlane.xlu0 %1628
      %v1630 = vsel %vm977, %v1596, 0.0
      %1631 = vadd.xlane.f32.xlu0 %v1630
      %v1632 = vpop.xlane.xlu0 %1631
      %v1633 = vsel %vm977, %v1597, 0.0
      %1634 = vadd.xlane.f32.xlu0 %v1633
      %v1635 = vpop.xlane.xlu0 %1634
      %v1636 = vsel %vm977, %v1598, 0.0
      %1637 = vadd.xlane.f32.xlu0 %v1636
      %v1638 = vpop.xlane.xlu0 %1637
      %v1639 = vsel %vm977, %v1599, 0.0
      %1640 = vadd.xlane.f32.xlu0 %v1639
      %v1641 = vpop.xlane.xlu0 %1640
      %v1642 = vsel %vm977, %v1600, 0.0
      %1643 = vadd.xlane.f32.xlu0 %v1642
      %v1644 = vpop.xlane.xlu0 %1643
      %v1645 = vsel %vm977, %v1601, 0.0
      %1646 = vadd.xlane.f32.xlu0 %v1645
      %v1647 = vpop.xlane.xlu0 %1646
      %v1648 = vsel %vm977, %v1602, 0.0
      %1649 = vadd.xlane.f32.xlu0 %v1648
      %v1650 = vpop.xlane.xlu0 %1649
      %v1651 = vsub.f32 %v1459, %v1605
      %v1652 = vsub.f32 %v1460, %v1608
      %v1653 = vsub.f32 %v1461, %v1611
      %v1654 = vsub.f32 %v1462, %v1614
      %v1655 = vsub.f32 %v1463, %v1617
      %v1656 = vsub.f32 %v1464, %v1620
      %v1657 = vsub.f32 %v1465, %v1623
      %v1658 = vsub.f32 %v1466, %v1626
      %v1659 = vsub.f32 %v1467, %v1629
      %v1660 = vsub.f32 %v1468, %v1632
      %v1661 = vsub.f32 %v1469, %v1635
      %v1662 = vsub.f32 %v1470, %v1638
      %v1663 = vsub.f32 %v1471, %v1641
      %v1664 = vsub.f32 %v1472, %v1644
      %v1665 = vsub.f32 %v1473, %v1647
      %v1666 = vsub.f32 %v1474, %v1650
      %1667 = vst.msk [vmem:[%s316] sm:$0xff] %vm1314, %v1651
      %1668 = vst.msk [vmem:[%s316 + $0x8] sm:$0xff] %vm1314, %v1652
      %1669 = vst.msk [vmem:[%s316 + $0x10] sm:$0xff] %vm1314, %v1653
      %1670 = vst.msk [vmem:[%s316 + $0x18] sm:$0xff] %vm1314, %v1654
      %1671 = vst.msk [vmem:[%s316 + $0x20] sm:$0xff] %vm1314, %v1655
      %1672 = vst.msk [vmem:[%s316 + $0x28] sm:$0xff] %vm1314, %v1656
      %1673 = vst.msk [vmem:[%s316 + $0x30] sm:$0xff] %vm1314, %v1657
      %1674 = vst.msk [vmem:[%s316 + $0x38] sm:$0xff] %vm1314, %v1658
      %1675 = vst.msk [vmem:[%s316 + $0x40] sm:$0xff] %vm1314, %v1659
      %1676 = vst.msk [vmem:[%s316 + $0x48] sm:$0xff] %vm1314, %v1660
      %1677 = vst.msk [vmem:[%s316 + $0x50] sm:$0xff] %vm1314, %v1661
      %1678 = vst.msk [vmem:[%s316 + $0x58] sm:$0xff] %vm1314, %v1662
      %1679 = vst.msk [vmem:[%s316 + $0x60] sm:$0xff] %vm1314, %v1663
      %1680 = vst.msk [vmem:[%s316 + $0x68] sm:$0xff] %vm1314, %v1664
      %1681 = vst.msk [vmem:[%s316 + $0x70] sm:$0xff] %vm1314, %v1665
      %1682 = vst.msk [vmem:[%s316 + $0x78] sm:$0xff] %vm1314, %v1666
      %s1683 = smul.u32 16, %s19
      %p1684 = scmp.lt.s32.totalorder %s1683, 31
      %s1685 = scalar_select %p1684, %s1683, 31
      %s1686 = smul.addr %s1685, 8
      %s1687 = scalar_lea.vmem %s6, %s1686
      %s1688 = smul.u32 16, %s19
      %p1689 = scmp.lt.s32.totalorder %s1688, 31
      %s1690 = scalar_select %p1689, %s1688, 31
      %s1691 = smul.addr %s1690, 8
      %s1692 = scalar_lea.vmem %s7, %s1691
      // Predicated region
      $region45: #{simple_moe_forward.1} parent=43 // pred_check
        %p1693 = pneg %p173
      $region46: #{simple_moe_forward.1} parent=43 // pred_check_branch
        %1695 = sbr.rel (%p1693) target = $region48
      $region47: #{simple_moe_forward.1} parent=43 // pred_region
        %s1696 = smul.u32 16, %s19
      $region48: #{simple_moe_forward.1} parent=43 // pred_fallthru
        _
      // Predicated region
      $region49: #{simple_moe_forward.1} parent=43 // pred_check
        %p1697 = pneg %p199
      $region50: #{simple_moe_forward.1} parent=43 // pred_check_branch
        %1699 = sbr.rel (%p1697) target = $region52
      $region51: #{simple_moe_forward.1} parent=43 // pred_region
        %s1700 = smul.u32 16, %s19
      $region52: #{simple_moe_forward.1} parent=43 // pred_fallthru
        _
    $region44: #{simple_moe_forward.1} parent=5 // pred_fallthru
      _
    %p1701 = scmp.le.s32.totalorder 2, %s14
    // Predicated region
    $region53: #{simple_moe_forward.1} parent=5 // pred_check
      %p1702 = pneg %p1701
    $region54: #{simple_moe_forward.1} parent=5 // pred_check_branch
      %1704 = sbr.rel (%p1702) target = $region56
    $region55: #{simple_moe_forward.1} parent=5 // pred_region
      %s1705 = ssub.s32 %s14, 2
      // Predicated region
      $region57: #{simple_moe_forward.1} parent=55 // pred_check
        %p1706 = pneg %p179
      $region58: #{simple_moe_forward.1} parent=55 // pred_check_branch
        %1708 = sbr.rel (%p1706) target = $region60
      $region59: #{simple_moe_forward.1} parent=55 // pred_region
        %s1709 = smul.u32 16, %s20
        %p1710 = scmp.lt.s32.totalorder %s1709, 31
        %s1711 = scalar_select %p1710, %s1709, 31
        %s1712 = smul.addr %s1711, 8
        %s1713 = scalar_lea.vmem %s6, %s1712
      $region60: #{simple_moe_forward.1} parent=55 // pred_fallthru
        _
      // Predicated region
      $region61: #{simple_moe_forward.1} parent=55 // pred_check
        %p1714 = pneg %p205
      $region62: #{simple_moe_forward.1} parent=55 // pred_check_branch
        %1716 = sbr.rel (%p1714) target = $region64
      $region63: #{simple_moe_forward.1} parent=55 // pred_region
        %s1717 = smul.u32 16, %s20
        %p1718 = scmp.lt.s32.totalorder %s1717, 31
        %s1719 = scalar_select %p1718, %s1717, 31
        %s1720 = smul.addr %s1719, 8
        %s1721 = scalar_lea.vmem %s7, %s1720
      $region64: #{simple_moe_forward.1} parent=55 // pred_fallthru
        _
    $region56: #{simple_moe_forward.1} parent=5 // pred_fallthru
      _
  $region6: #{simple_moe_forward.1} parent=0 // loop_footer
    %s18 = sadd.s32 1, %s14
  $region7: #{simple_moe_forward.1} parent=0 // loop_footer_branch
    %13 = sbr.rel target = $region3
  $region8: #{simple_moe_forward.1} parent=0 // loop_exit
    _

</llo_original>
